<compile_context>
chip_gen: v6e
topology: v6e:2x2x1
jax: 0.10.0
libtpu: 0.0.40
codegen_flags: <defaults>
</compile_context>

<pallas_src>
import functools
import math

import jax
import jax.numpy as jnp
import numpy as np
from jax.experimental import pallas as pl
from jax.experimental.pallas import tpu as pltpu


def _layernorm(x, gamma, beta, eps=1e-5):
    mu = jnp.mean(x, axis=-1, keepdims=True)
    var = jnp.mean(jnp.square(x - mu), axis=-1, keepdims=True)
    return (x - mu) * jax.lax.rsqrt(var + eps) * gamma + beta


def _attention_and_ffn(q, k, v, addmask, residual,
                       wo, bo, g1, b1, wf1, bf1, wf2, bf2, g2, b2,
                       *, heads, compute_dtype):
    """Everything after the QKV projections.  q/k/v are f32 (L, E)."""
    Lq, E = q.shape
    Lk = k.shape[0]
    D = E // heads
    cdt = compute_dtype
    approx = np.dtype(compute_dtype) != np.dtype(np.float32)

    # Fold the 1/sqrt(E) softmax scale into q: L*E multiplies instead of H*L^2.
    q = q * jnp.float32(1.0 / math.sqrt(E))

    # Batched multi-head attention: one MXU pass over all heads (batch dim = h).
    qh = q.reshape(Lq, heads, D).astype(cdt)
    kh = k.reshape(Lk, heads, D).astype(cdt)
    vh = v.reshape(Lk, heads, D).astype(cdt)

    energy = jnp.einsum("qhd,khd->hqk", qh, kh,
                        preferred_element_type=jnp.float32)      # (H, Lq, Lk)
    energy = energy + addmask[None, :, :]                        # hoisted additive mask

    # Softmax statistics stay f32 (v5e has no bf16 VPU/EUP).
    m = jnp.max(energy, axis=-1, keepdims=True)
    p = jnp.exp(energy - m)
    s = jnp.sum(p, axis=-1, keepdims=True)
    attn = p * pl.reciprocal(s, approx=approx)                   # EUP divide

    # Context einsum writes directly in (q, h, d) order -> plain reshape to (L, E).
    ctx = jnp.einsum("hqk,khd->qhd", attn.astype(cdt), vh,
                     preferred_element_type=jnp.float32)         # (Lq, H, D)
    attn_out = ctx.reshape(Lq, E)

    attn_out = jnp.dot(attn_out.astype(cdt), wo,
                       preferred_element_type=jnp.float32) + bo

    # Residual + LayerNorm 1 (dropout = identity in eval mode).
    x = _layernorm(attn_out + residual, g1, b1)

    # Feed-forward: Linear -> ReLU -> Linear.
    # TODO(synk): tile over the FE dim for large forward_expansion (v7x VMEM).
    h1 = jnp.dot(x.astype(cdt), wf1, preferred_element_type=jnp.float32) + bf1
    h1 = jnp.maximum(h1, 0.0)
    ff = jnp.dot(h1.astype(cdt), wf2, preferred_element_type=jnp.float32) + bf2

    # Residual + LayerNorm 2 (dropout = identity in eval mode).
    return _layernorm(ff + x, g2, b2)


def _self_attn_block_kernel(
        x_ref, mask_ref, wqkv_ref, bqkv_ref, wo_ref, bo_ref,
        g1_ref, b1_ref, wf1_ref, bf1_ref, wf2_ref, bf2_ref, g2_ref, b2_ref,
        out_ref, *, heads, compute_dtype):
    """value is key is query: fused (E, 3E) QKV projection -> single MXU pass."""
    x = x_ref[...]                                               # (L, E) f32
    E = x.shape[-1]
    qkv = jnp.dot(x.astype(compute_dtype), wqkv_ref[...],
                  preferred_element_type=jnp.float32) + bqkv_ref[...]
    q, k, v = qkv[:, :E], qkv[:, E:2 * E], qkv[:, 2 * E:]
    out = _attention_and_ffn(
        q, k, v, mask_ref[...], x,
        wo_ref[...], bo_ref[...], g1_ref[...], b1_ref[...],
        wf1_ref[...], bf1_ref[...], wf2_ref[...], bf2_ref[...],
        g2_ref[...], b2_ref[...],
        heads=heads, compute_dtype=compute_dtype)
    out_ref[...] = out.astype(out_ref.dtype)


def _cross_attn_block_kernel(
        v_ref, k_ref, q_ref, mask_ref, wqkv_ref, bqkv_ref, wo_ref, bo_ref,
        g1_ref, b1_ref, wf1_ref, bf1_ref, wf2_ref, bf2_ref, g2_ref, b2_ref,
        out_ref, *, heads, compute_dtype):
    """General case (distinct value/key/query inputs): per-projection matmuls."""
    E = q_ref.shape[-1]
    wqkv = wqkv_ref[...]
    bqkv = bqkv_ref[...]
    q_in = q_ref[...]
    q = jnp.dot(q_in.astype(compute_dtype), wqkv[:, :E],
                preferred_element_type=jnp.float32) + bqkv[:, :E]
    k = jnp.dot(k_ref[...].astype(compute_dtype), wqkv[:, E:2 * E],
                preferred_element_type=jnp.float32) + bqkv[:, E:2 * E]
    v = jnp.dot(v_ref[...].astype(compute_dtype), wqkv[:, 2 * E:],
                preferred_element_type=jnp.float32) + bqkv[:, 2 * E:]
    out = _attention_and_ffn(
        q, k, v, mask_ref[...], q_in,
        wo_ref[...], bo_ref[...], g1_ref[...], b1_ref[...],
        wf1_ref[...], bf1_ref[...], wf2_ref[...], bf2_ref[...],
        g2_ref[...], b2_ref[...],
        heads=heads, compute_dtype=compute_dtype)
    out_ref[...] = out.astype(out_ref.dtype)


def transformer_block(value, key, query, mask, params, *, heads,
                      compute_dtype=jnp.float32):
    B, L, E = query.shape
    FE = params["wf1"].shape[1]
    cdt = np.dtype(compute_dtype)

    # Fused QKV weight / bias, column order [q | k | v].  Weights cast to the
    # matmul operand dtype; biases / LN params / softmax stay f32.
    wqkv = jnp.concatenate(
        [params["wq"], params["wk"], params["wv"]], axis=1).astype(compute_dtype)
    bqkv = jnp.concatenate(
        [params["bq"], params["bk"], params["bv"]], axis=1).astype(jnp.float32)
    wo = params["wo"].astype(compute_dtype)
    wf1 = params["wf1"].astype(compute_dtype)
    wf2 = params["wf2"].astype(compute_dtype)
    bo, g1, b1 = params["bo"], params["g1"], params["b1"]
    bf1, bf2, g2, b2 = params["bf1"], params["bf2"], params["g2"], params["b2"]

    # Additive mask, computed once (not per head / per grid step).
    addmask = jnp.where(mask == 0, jnp.float32(-1e20), jnp.float32(0.0))

    per_batch = pl.BlockSpec((pl.Squeezed(), L, E), lambda b: (b, 0, 0))
    full2d = lambda shape: pl.BlockSpec(shape, lambda b: (0, 0))

    weight_specs = [
        full2d((E, 3 * E)), full2d((1, 3 * E)),   # Wqkv, bqkv
        full2d((E, E)), full2d((1, E)),           # Wo, bo
        full2d((1, E)), full2d((1, E)),           # ln1 gamma, beta
        full2d((E, FE)), full2d((1, FE)),         # Wf1, bf1
        full2d((FE, E)), full2d((1, E)),          # Wf2, bf2
        full2d((1, E)), full2d((1, E)),           # ln2 gamma, beta
    ]
    weight_args = (wqkv, bqkv, wo, bo, g1, b1, wf1, bf1, wf2, bf2, g2, b2)

    self_attention = (value is key) and (key is query)
    if self_attention:
        kernel = functools.partial(
            _self_attn_block_kernel, heads=heads, compute_dtype=compute_dtype)
        in_specs = [per_batch, full2d((L, L))] + weight_specs
        args = (query, addmask) + weight_args
        n_act = 1
    else:
        kernel = functools.partial(
            _cross_attn_block_kernel, heads=heads, compute_dtype=compute_dtype)
        in_specs = [per_batch, per_batch, per_batch, full2d((L, L))] + weight_specs
        args = (value, key, query, addmask) + weight_args
        n_act = 3

    # Scoped-VMEM limit sized from the actual resident set (weights resident
    # across the grid + double-buffered activation blocks + temporaries).
    weight_bytes = (3 * E * E + E * E + E * FE + FE * E) * cdt.itemsize \
        + (3 * E + 2 * E + FE + E + 4 * E) * 4
    block_bytes = (n_act + 1) * L * E * 4 + L * L * 4
    temp_bytes = (2 * heads * L * L + 4 * L * E + L * FE + 3 * L * E) * 4
    resident = 2 * (weight_bytes + block_bytes) + temp_bytes
    vmem_limit = int(min(64 * 2 ** 20, max(2 * resident, 16 * 2 ** 20)))

    return pl.pallas_call(
        kernel,
        out_shape=jax.ShapeDtypeStruct((B, L, E), jnp.float32),
        grid=(B,),
        in_specs=in_specs,
        out_specs=per_batch,
        compiler_params=pltpu.CompilerParams(
            dimension_semantics=("parallel",),
            vmem_limit_bytes=vmem_limit),
    )(*args)


def _reference(value, key, query, mask, params, *, heads):
    """Pure-JAX reference mirroring the PyTorch forward (eval mode), f32."""
    B, L, E = query.shape
    D = E // heads
    v = value @ params["wv"] + params["bv"]
    k = key @ params["wk"] + params["bk"]
    q = query @ params["wq"] + params["bq"]
    v = v.reshape(B, L, heads, D)
    k = k.reshape(B, L, heads, D)
    q = q.reshape(B, L, heads, D)
    energy = jnp.einsum("bqhd,bkhd->bhqk", q, k)
    energy = jnp.where(mask[None, None] == 0, -1e20, energy)
    attn = jax.nn.softmax(energy / math.sqrt(E), axis=3)
    out = jnp.einsum("bhql,blhd->bqhd", attn, v).reshape(B, L, E)
    out = out @ params["wo"] + params["bo"]
    x = _layernorm(out + query, params["g1"], params["b1"])
    ff = jnp.maximum(x @ params["wf1"] + params["bf1"], 0.0)
    ff = ff @ params["wf2"] + params["bf2"]
    return _layernorm(ff + x, params["g2"], params["b2"])


def init_params(key, embed_size, heads, forward_expansion):
    E = embed_size
    FE = forward_expansion * embed_size
    ks = jax.random.split(key, 12)
    s = 0.05
    return {
        "wv": jax.random.normal(ks[0], (E, E), jnp.float32) * s,
        "bv": jax.random.normal(ks[1], (1, E), jnp.float32) * s,
        "wk": jax.random.normal(ks[2], (E, E), jnp.float32) * s,
        "bk": jax.random.normal(ks[3], (1, E), jnp.float32) * s,
        "wq": jax.random.normal(ks[4], (E, E), jnp.float32) * s,
        "bq": jax.random.normal(ks[5], (1, E), jnp.float32) * s,
        "wo": jax.random.normal(ks[6], (E, E), jnp.float32) * s,
        "bo": jax.random.normal(ks[7], (1, E), jnp.float32) * s,
        "g1": jnp.ones((1, E), jnp.float32),
        "b1": jnp.zeros((1, E), jnp.float32),
        "wf1": jax.random.normal(ks[8], (E, FE), jnp.float32) * s,
        "bf1": jax.random.normal(ks[9], (1, FE), jnp.float32) * s,
        "wf2": jax.random.normal(ks[10], (FE, E), jnp.float32) * s,
        "bf2": jax.random.normal(ks[11], (1, E), jnp.float32) * s,
        "g2": jnp.ones((1, E), jnp.float32),
        "b2": jnp.zeros((1, E), jnp.float32),
    }


if __name__ == "__main__":
    B, L, E = 2, 16, 32
    heads = 4
    forward_expansion = 2

    root = jax.random.PRNGKey(0)
    k_p, k_v, k_k, k_q = jax.random.split(root, 4)

    params = init_params(k_p, E, heads, forward_expansion)
    value = jax.random.normal(k_v, (B, L, E), jnp.float32)
    key = jax.random.normal(k_k, (B, L, E), jnp.float32)
    query = jax.random.normal(k_q, (B, L, E), jnp.float32)
    # Causal-style mask (1 = keep, 0 = mask out), broadcast over batch & heads.
    mask = jnp.tril(jnp.ones((L, L), jnp.float32))

    # 1) General (cross-attention) path, f32 operands.
    out = transformer_block(value, key, query, mask, params,
                            heads=heads, compute_dtype=jnp.float32)
    out = jax.block_until_ready(out)
    ref = _reference(value, key, query, mask, params, heads=heads)
    np.testing.assert_allclose(np.asarray(out), np.asarray(ref),
                               rtol=1e-4, atol=1e-4)

    # 2) Self-attention path (fused QKV, single projection matmul), f32.
    out_sa = transformer_block(query, query, query, mask, params,
                               heads=heads, compute_dtype=jnp.float32)
    out_sa = jax.block_until_ready(out_sa)
    ref_sa = _reference(query, query, query, mask, params, heads=heads)
    np.testing.assert_allclose(np.asarray(out_sa), np.asarray(ref_sa),
                               rtol=1e-4, atol=1e-4)

    # 3) Self-attention path with bf16 matmul operands / f32 accumulation.
    out_bf = transformer_block(query, query, query, mask, params,
                               heads=heads, compute_dtype=jnp.bfloat16)
    out_bf = jax.block_until_ready(out_bf)
    np.testing.assert_allclose(np.asarray(out_bf), np.asarray(ref_sa),
                               rtol=5e-2, atol=5e-2)

    print("KERNEL_OK")
</pallas_src>

<mosaic_0001>
module attributes {stable_mosaic.version = 11 : i64} {
  func.func @_cross_attn_block_kernel(%arg0: i32, %arg1: memref<1x16x32xf32, #tpu.memory_space<vmem>>, %arg2: memref<1x16x32xf32, #tpu.memory_space<vmem>>, %arg3: memref<1x16x32xf32, #tpu.memory_space<vmem>>, %arg4: memref<16x16xf32, #tpu.memory_space<vmem>>, %arg5: memref<32x96xf32, #tpu.memory_space<vmem>>, %arg6: memref<1x96xf32, #tpu.memory_space<vmem>>, %arg7: memref<32x32xf32, #tpu.memory_space<vmem>>, %arg8: memref<1x32xf32, #tpu.memory_space<vmem>>, %arg9: memref<1x32xf32, #tpu.memory_space<vmem>>, %arg10: memref<1x32xf32, #tpu.memory_space<vmem>>, %arg11: memref<32x64xf32, #tpu.memory_space<vmem>>, %arg12: memref<1x64xf32, #tpu.memory_space<vmem>>, %arg13: memref<64x32xf32, #tpu.memory_space<vmem>>, %arg14: memref<1x32xf32, #tpu.memory_space<vmem>>, %arg15: memref<1x32xf32, #tpu.memory_space<vmem>>, %arg16: memref<1x32xf32, #tpu.memory_space<vmem>>, %arg17: memref<1x16x32xf32, #tpu.memory_space<vmem>>) attributes {dimension_semantics = [#tpu.dimension_semantics<parallel>], iteration_bounds = array<i64: 2>, scalar_prefetch = 0 : i64, scratch_operands = 0 : i64, tpu.core_type = #tpu.core_type<tc>, window_params = [{transform_indices = @transform_0, window_bounds = array<i64: 1, 16, 32>}, {transform_indices = @transform_1, window_bounds = array<i64: 1, 16, 32>}, {transform_indices = @transform_2, window_bounds = array<i64: 1, 16, 32>}, {pipeline_mode = #tpu.pipeline_mode<synchronous>, transform_indices = @transform_3, window_bounds = array<i64: 16, 16>}, {pipeline_mode = #tpu.pipeline_mode<synchronous>, transform_indices = @transform_4, window_bounds = array<i64: 32, 96>}, {pipeline_mode = #tpu.pipeline_mode<synchronous>, transform_indices = @transform_5, window_bounds = array<i64: 1, 96>}, {pipeline_mode = #tpu.pipeline_mode<synchronous>, transform_indices = @transform_6, window_bounds = array<i64: 32, 32>}, {pipeline_mode = #tpu.pipeline_mode<synchronous>, transform_indices = @transform_7, window_bounds = array<i64: 1, 32>}, {pipeline_mode = #tpu.pipeline_mode<synchronous>, transform_indices = @transform_8, window_bounds = array<i64: 1, 32>}, {pipeline_mode = #tpu.pipeline_mode<synchronous>, transform_indices = @transform_9, window_bounds = array<i64: 1, 32>}, {pipeline_mode = #tpu.pipeline_mode<synchronous>, transform_indices = @transform_10, window_bounds = array<i64: 32, 64>}, {pipeline_mode = #tpu.pipeline_mode<synchronous>, transform_indices = @transform_11, window_bounds = array<i64: 1, 64>}, {pipeline_mode = #tpu.pipeline_mode<synchronous>, transform_indices = @transform_12, window_bounds = array<i64: 64, 32>}, {pipeline_mode = #tpu.pipeline_mode<synchronous>, transform_indices = @transform_13, window_bounds = array<i64: 1, 32>}, {pipeline_mode = #tpu.pipeline_mode<synchronous>, transform_indices = @transform_14, window_bounds = array<i64: 1, 32>}, {pipeline_mode = #tpu.pipeline_mode<synchronous>, transform_indices = @transform_15, window_bounds = array<i64: 1, 32>}, {transform_indices = @transform_16, window_bounds = array<i64: 1, 16, 32>}]} {
    %c0 = arith.constant 0 : index
    %c0_0 = arith.constant 0 : index
    %0 = vector.load %arg5[%c0, %c0_0] : memref<32x96xf32, #tpu.memory_space<vmem>>, vector<32x96xf32>
    %c0_1 = arith.constant 0 : index
    %c0_2 = arith.constant 0 : index
    %1 = vector.load %arg6[%c0_1, %c0_2] : memref<1x96xf32, #tpu.memory_space<vmem>>, vector<1x96xf32>
    %c0_3 = arith.constant 0 : index
    %c0_4 = arith.constant 0 : index
    %c0_5 = arith.constant 0 : index
    %2 = vector.load %arg3[%c0_3, %c0_4, %c0_5] : memref<1x16x32xf32, #tpu.memory_space<vmem>>, vector<1x16x32xf32>
    %3 = vector.shape_cast %2 : vector<1x16x32xf32> to vector<16x32xf32>
    %4 = vector.extract_strided_slice %0 {offsets = [0, 0], sizes = [32, 32], strides = [1, 1]} : vector<32x96xf32> to vector<32x32xf32>
    %cst = arith.constant dense<0.000000e+00> : vector<16x32xf32>
    %5 = tpu.matmul %3, %4, %cst {dimension_numbers = #tpu.dot_dimension_numbers<[1], [0], [0], [1], [0, 0, 1, 1], [], []>} : vector<16x32xf32>, vector<32x32xf32>, vector<16x32xf32> -> vector<16x32xf32>
    %6 = vector.extract_strided_slice %1 {offsets = [0, 0], sizes = [1, 32], strides = [1, 1]} : vector<1x96xf32> to vector<1x32xf32>
    %7 = vector.broadcast %6 : vector<1x32xf32> to vector<16x32xf32>
    %8 = arith.addf %5, %7 : vector<16x32xf32>
    %c0_6 = arith.constant 0 : index
    %c0_7 = arith.constant 0 : index
    %c0_8 = arith.constant 0 : index
    %9 = vector.load %arg2[%c0_6, %c0_7, %c0_8] : memref<1x16x32xf32, #tpu.memory_space<vmem>>, vector<1x16x32xf32>
    %10 = vector.shape_cast %9 : vector<1x16x32xf32> to vector<16x32xf32>
    %11 = vector.extract_strided_slice %0 {offsets = [0, 32], sizes = [32, 32], strides = [1, 1]} : vector<32x96xf32> to vector<32x32xf32>
    %cst_9 = arith.constant dense<0.000000e+00> : vector<16x32xf32>
    %12 = tpu.matmul %10, %11, %cst_9 {dimension_numbers = #tpu.dot_dimension_numbers<[1], [0], [0], [1], [0, 0, 1, 1], [], []>} : vector<16x32xf32>, vector<32x32xf32>, vector<16x32xf32> -> vector<16x32xf32>
    %13 = vector.extract_strided_slice %1 {offsets = [0, 32], sizes = [1, 32], strides = [1, 1]} : vector<1x96xf32> to vector<1x32xf32>
    %14 = vector.broadcast %13 : vector<1x32xf32> to vector<16x32xf32>
    %15 = arith.addf %12, %14 : vector<16x32xf32>
    %c0_10 = arith.constant 0 : index
    %c0_11 = arith.constant 0 : index
    %c0_12 = arith.constant 0 : index
    %16 = vector.load %arg1[%c0_10, %c0_11, %c0_12] : memref<1x16x32xf32, #tpu.memory_space<vmem>>, vector<1x16x32xf32>
    %17 = vector.shape_cast %16 : vector<1x16x32xf32> to vector<16x32xf32>
    %18 = vector.extract_strided_slice %0 {offsets = [0, 64], sizes = [32, 32], strides = [1, 1]} : vector<32x96xf32> to vector<32x32xf32>
    %cst_13 = arith.constant dense<0.000000e+00> : vector<16x32xf32>
    %19 = tpu.matmul %17, %18, %cst_13 {dimension_numbers = #tpu.dot_dimension_numbers<[1], [0], [0], [1], [0, 0, 1, 1], [], []>} : vector<16x32xf32>, vector<32x32xf32>, vector<16x32xf32> -> vector<16x32xf32>
    %20 = vector.extract_strided_slice %1 {offsets = [0, 64], sizes = [1, 32], strides = [1, 1]} : vector<1x96xf32> to vector<1x32xf32>
    %21 = vector.broadcast %20 : vector<1x32xf32> to vector<16x32xf32>
    %22 = arith.addf %19, %21 : vector<16x32xf32>
    %c0_14 = arith.constant 0 : index
    %c0_15 = arith.constant 0 : index
    %23 = vector.load %arg4[%c0_14, %c0_15] : memref<16x16xf32, #tpu.memory_space<vmem>>, vector<16x16xf32>
    %c0_16 = arith.constant 0 : index
    %c0_17 = arith.constant 0 : index
    %24 = vector.load %arg7[%c0_16, %c0_17] : memref<32x32xf32, #tpu.memory_space<vmem>>, vector<32x32xf32>
    %c0_18 = arith.constant 0 : index
    %c0_19 = arith.constant 0 : index
    %25 = vector.load %arg8[%c0_18, %c0_19] : memref<1x32xf32, #tpu.memory_space<vmem>>, vector<1x32xf32>
    %c0_20 = arith.constant 0 : index
    %c0_21 = arith.constant 0 : index
    %26 = vector.load %arg9[%c0_20, %c0_21] : memref<1x32xf32, #tpu.memory_space<vmem>>, vector<1x32xf32>
    %c0_22 = arith.constant 0 : index
    %c0_23 = arith.constant 0 : index
    %27 = vector.load %arg10[%c0_22, %c0_23] : memref<1x32xf32, #tpu.memory_space<vmem>>, vector<1x32xf32>
    %c0_24 = arith.constant 0 : index
    %c0_25 = arith.constant 0 : index
    %28 = vector.load %arg11[%c0_24, %c0_25] : memref<32x64xf32, #tpu.memory_space<vmem>>, vector<32x64xf32>
    %c0_26 = arith.constant 0 : index
    %c0_27 = arith.constant 0 : index
    %29 = vector.load %arg12[%c0_26, %c0_27] : memref<1x64xf32, #tpu.memory_space<vmem>>, vector<1x64xf32>
    %c0_28 = arith.constant 0 : index
    %c0_29 = arith.constant 0 : index
    %30 = vector.load %arg13[%c0_28, %c0_29] : memref<64x32xf32, #tpu.memory_space<vmem>>, vector<64x32xf32>
    %c0_30 = arith.constant 0 : index
    %c0_31 = arith.constant 0 : index
    %31 = vector.load %arg14[%c0_30, %c0_31] : memref<1x32xf32, #tpu.memory_space<vmem>>, vector<1x32xf32>
    %c0_32 = arith.constant 0 : index
    %c0_33 = arith.constant 0 : index
    %32 = vector.load %arg15[%c0_32, %c0_33] : memref<1x32xf32, #tpu.memory_space<vmem>>, vector<1x32xf32>
    %c0_34 = arith.constant 0 : index
    %c0_35 = arith.constant 0 : index
    %33 = vector.load %arg16[%c0_34, %c0_35] : memref<1x32xf32, #tpu.memory_space<vmem>>, vector<1x32xf32>
    %cst_36 = arith.constant 0.176776692 : f32
    %34 = vector.broadcast %cst_36 : f32 to vector<16x32xf32>
    %35 = arith.mulf %8, %34 : vector<16x32xf32>
    %36 = vector.shape_cast %35 : vector<16x32xf32> to vector<16x4x8xf32>
    %37 = vector.shape_cast %15 : vector<16x32xf32> to vector<16x4x8xf32>
    %38 = vector.shape_cast %22 : vector<16x32xf32> to vector<16x4x8xf32>
    "tpu.trace_start"() <{level = 10 : i32, message = "qhd,khd->hqk"}> : () -> ()
    %cst_37 = arith.constant dense<0.000000e+00> : vector<4x16x16xf32>
    %39 = tpu.matmul %36, %37, %cst_37 {dimension_numbers = #tpu.dot_dimension_numbers<[2], [2], [0], [0], [0, 1, 0, 0, 1, 0], [1], [1]>} : vector<16x4x8xf32>, vector<16x4x8xf32>, vector<4x16x16xf32> -> vector<4x16x16xf32>
    "tpu.trace_stop"() : () -> ()
    %40 = vector.shape_cast %23 : vector<16x16xf32> to vector<1x16x16xf32>
    %41 = vector.broadcast %40 : vector<1x16x16xf32> to vector<4x16x16xf32>
    %42 = arith.addf %39, %41 : vector<4x16x16xf32>
    %cst_38 = arith.constant dense<0xFF800000> : vector<4x16xf32>
    %43 = vector.multi_reduction <maximumf>, %42, %cst_38 [2] : vector<4x16x16xf32> to vector<4x16xf32>
    %44 = vector.shape_cast %43 : vector<4x16xf32> to vector<4x16x1xf32>
    %45 = vector.broadcast %44 : vector<4x16x1xf32> to vector<4x16x16xf32>
    %46 = arith.subf %42, %45 : vector<4x16x16xf32>
    %47 = math.exp %46 : vector<4x16x16xf32>
    %cst_39 = arith.constant dense<0.000000e+00> : vector<4x16xf32>
    %48 = vector.multi_reduction <add>, %47, %cst_39 [2] : vector<4x16x16xf32> to vector<4x16xf32>
    %49 = vector.shape_cast %48 : vector<4x16xf32> to vector<4x16x1xf32>
    %50 = tpu.reciprocal %49 : vector<4x16x1xf32> -> vector<4x16x1xf32>
    %51 = vector.broadcast %50 : vector<4x16x1xf32> to vector<4x16x16xf32>
    %52 = arith.mulf %47, %51 : vector<4x16x16xf32>
    "tpu.trace_start"() <{level = 10 : i32, message = "hqk,khd->qhd"}> : () -> ()
    %cst_40 = arith.constant dense<0.000000e+00> : vector<4x8x16xf32>
    %53 = tpu.matmul %38, %52, %cst_40 {dimension_numbers = #tpu.dot_dimension_numbers<[0], [2], [2], [1], [0, 1, 0, 2, 1, 1], [1], [0]>} : vector<16x4x8xf32>, vector<4x16x16xf32>, vector<4x8x16xf32> -> vector<4x8x16xf32>
    %54 = tpu.transpose %53, [2, 0, 1] : vector<4x8x16xf32> -> vector<16x4x8xf32>
    "tpu.trace_stop"() : () -> ()
    %55 = vector.shape_cast %54 : vector<16x4x8xf32> to vector<16x32xf32>
    %cst_41 = arith.constant dense<0.000000e+00> : vector<16x32xf32>
    %56 = tpu.matmul %55, %24, %cst_41 {dimension_numbers = #tpu.dot_dimension_numbers<[1], [0], [0], [1], [0, 0, 1, 1], [], []>} : vector<16x32xf32>, vector<32x32xf32>, vector<16x32xf32> -> vector<16x32xf32>
    %57 = vector.broadcast %25 : vector<1x32xf32> to vector<16x32xf32>
    %58 = arith.addf %56, %57 : vector<16x32xf32>
    %59 = arith.addf %58, %3 : vector<16x32xf32>
    %cst_42 = arith.constant dense<0.000000e+00> : vector<16xf32>
    %60 = vector.multi_reduction <add>, %59, %cst_42 [1] : vector<16x32xf32> to vector<16xf32>
    %61 = vector.shape_cast %60 : vector<16xf32> to vector<16x1xf32>
    %cst_43 = arith.constant 3.200000e+01 : f32
    %62 = vector.broadcast %cst_43 : f32 to vector<16x1xf32>
    %63 = arith.divf %61, %62 : vector<16x1xf32>
    %64 = vector.broadcast %63 : vector<16x1xf32> to vector<16x32xf32>
    %65 = arith.subf %59, %64 : vector<16x32xf32>
    %66 = arith.mulf %65, %65 : vector<16x32xf32>
    %cst_44 = arith.constant dense<0.000000e+00> : vector<16xf32>
    %67 = vector.multi_reduction <add>, %66, %cst_44 [1] : vector<16x32xf32> to vector<16xf32>
    %68 = vector.shape_cast %67 : vector<16xf32> to vector<16x1xf32>
    %cst_45 = arith.constant 3.200000e+01 : f32
    %69 = vector.broadcast %cst_45 : f32 to vector<16x1xf32>
    %70 = arith.divf %68, %69 : vector<16x1xf32>
    %71 = vector.broadcast %63 : vector<16x1xf32> to vector<16x32xf32>
    %72 = arith.subf %59, %71 : vector<16x32xf32>
    %cst_46 = arith.constant 9.99999974E-6 : f32
    %73 = vector.broadcast %cst_46 : f32 to vector<16x1xf32>
    %74 = arith.addf %70, %73 : vector<16x1xf32>
    %75 = math.rsqrt %74 : vector<16x1xf32>
    %76 = vector.broadcast %75 : vector<16x1xf32> to vector<16x32xf32>
    %77 = arith.mulf %72, %76 : vector<16x32xf32>
    %78 = vector.broadcast %26 : vector<1x32xf32> to vector<16x32xf32>
    %79 = arith.mulf %77, %78 : vector<16x32xf32>
    %80 = vector.broadcast %27 : vector<1x32xf32> to vector<16x32xf32>
    %81 = arith.addf %79, %80 : vector<16x32xf32>
    %cst_47 = arith.constant dense<0.000000e+00> : vector<16x64xf32>
    %82 = tpu.matmul %81, %28, %cst_47 {dimension_numbers = #tpu.dot_dimension_numbers<[1], [0], [0], [1], [0, 0, 1, 1], [], []>} : vector<16x32xf32>, vector<32x64xf32>, vector<16x64xf32> -> vector<16x64xf32>
    %83 = vector.broadcast %29 : vector<1x64xf32> to vector<16x64xf32>
    %84 = arith.addf %82, %83 : vector<16x64xf32>
    %cst_48 = arith.constant 0.000000e+00 : f32
    %85 = vector.broadcast %cst_48 : f32 to vector<16x64xf32>
    %86 = arith.maximumf %84, %85 : vector<16x64xf32>
    %cst_49 = arith.constant dense<0.000000e+00> : vector<16x32xf32>
    %87 = tpu.matmul %86, %30, %cst_49 {dimension_numbers = #tpu.dot_dimension_numbers<[1], [0], [0], [1], [0, 0, 1, 1], [], []>} : vector<16x64xf32>, vector<64x32xf32>, vector<16x32xf32> -> vector<16x32xf32>
    %88 = vector.broadcast %31 : vector<1x32xf32> to vector<16x32xf32>
    %89 = arith.addf %87, %88 : vector<16x32xf32>
    %90 = arith.addf %89, %81 : vector<16x32xf32>
    %cst_50 = arith.constant dense<0.000000e+00> : vector<16xf32>
    %91 = vector.multi_reduction <add>, %90, %cst_50 [1] : vector<16x32xf32> to vector<16xf32>
    %92 = vector.shape_cast %91 : vector<16xf32> to vector<16x1xf32>
    %cst_51 = arith.constant 3.200000e+01 : f32
    %93 = vector.broadcast %cst_51 : f32 to vector<16x1xf32>
    %94 = arith.divf %92, %93 : vector<16x1xf32>
    %95 = vector.broadcast %94 : vector<16x1xf32> to vector<16x32xf32>
    %96 = arith.subf %90, %95 : vector<16x32xf32>
    %97 = arith.mulf %96, %96 : vector<16x32xf32>
    %cst_52 = arith.constant dense<0.000000e+00> : vector<16xf32>
    %98 = vector.multi_reduction <add>, %97, %cst_52 [1] : vector<16x32xf32> to vector<16xf32>
    %99 = vector.shape_cast %98 : vector<16xf32> to vector<16x1xf32>
    %cst_53 = arith.constant 3.200000e+01 : f32
    %100 = vector.broadcast %cst_53 : f32 to vector<16x1xf32>
    %101 = arith.divf %99, %100 : vector<16x1xf32>
    %102 = vector.broadcast %94 : vector<16x1xf32> to vector<16x32xf32>
    %103 = arith.subf %90, %102 : vector<16x32xf32>
    %cst_54 = arith.constant 9.99999974E-6 : f32
    %104 = vector.broadcast %cst_54 : f32 to vector<16x1xf32>
    %105 = arith.addf %101, %104 : vector<16x1xf32>
    %106 = math.rsqrt %105 : vector<16x1xf32>
    %107 = vector.broadcast %106 : vector<16x1xf32> to vector<16x32xf32>
    %108 = arith.mulf %103, %107 : vector<16x32xf32>
    %109 = vector.broadcast %32 : vector<1x32xf32> to vector<16x32xf32>
    %110 = arith.mulf %108, %109 : vector<16x32xf32>
    %111 = vector.broadcast %33 : vector<1x32xf32> to vector<16x32xf32>
    %112 = arith.addf %110, %111 : vector<16x32xf32>
    %c0_55 = arith.constant 0 : index
    %c0_56 = arith.constant 0 : index
    %c0_57 = arith.constant 0 : index
    %113 = vector.load %arg17[%c0_55, %c0_56, %c0_57] : memref<1x16x32xf32, #tpu.memory_space<vmem>>, vector<1x16x32xf32>
    %114 = vector.shape_cast %113 : vector<1x16x32xf32> to vector<16x32xf32>
    %115 = vector.shape_cast %112 : vector<16x32xf32> to vector<1x16x32xf32>
    tpu.vector_store %arg17[%c0_55, %c0_56, %c0_57], %115 {strides = array<i32>} : memref<1x16x32xf32, #tpu.memory_space<vmem>>, vector<1x16x32xf32>,
    return
  }
  func.func @transform_0(%arg0: i32) -> (i32, i32, i32) {
    %c0_i32 = arith.constant 0 : i32
    %c0_i32_0 = arith.constant 0 : i32
    %c0_i32_1 = arith.constant 0 : i32
    return %arg0, %c0_i32, %c0_i32_0 : i32, i32, i32
  }
  func.func @transform_1(%arg0: i32) -> (i32, i32, i32) {
    %c0_i32 = arith.constant 0 : i32
    %c0_i32_0 = arith.constant 0 : i32
    %c0_i32_1 = arith.constant 0 : i32
    return %arg0, %c0_i32, %c0_i32_0 : i32, i32, i32
  }
  func.func @transform_2(%arg0: i32) -> (i32, i32, i32) {
    %c0_i32 = arith.constant 0 : i32
    %c0_i32_0 = arith.constant 0 : i32
    %c0_i32_1 = arith.constant 0 : i32
    return %arg0, %c0_i32, %c0_i32_0 : i32, i32, i32
  }
  func.func @transform_3(%arg0: i32) -> (i32, i32) {
    %c0_i32 = arith.constant 0 : i32
    %c0_i32_0 = arith.constant 0 : i32
    %c0_i32_1 = arith.constant 0 : i32
    return %c0_i32, %c0_i32_0 : i32, i32
  }
  func.func @transform_4(%arg0: i32) -> (i32, i32) {
    %c0_i32 = arith.constant 0 : i32
    %c0_i32_0 = arith.constant 0 : i32
    %c0_i32_1 = arith.constant 0 : i32
    return %c0_i32, %c0_i32_0 : i32, i32
  }
  func.func @transform_5(%arg0: i32) -> (i32, i32) {
    %c0_i32 = arith.constant 0 : i32
    %c0_i32_0 = arith.constant 0 : i32
    %c0_i32_1 = arith.constant 0 : i32
    return %c0_i32, %c0_i32_0 : i32, i32
  }
  func.func @transform_6(%arg0: i32) -> (i32, i32) {
    %c0_i32 = arith.constant 0 : i32
    %c0_i32_0 = arith.constant 0 : i32
    %c0_i32_1 = arith.constant 0 : i32
    return %c0_i32, %c0_i32_0 : i32, i32
  }
  func.func @transform_7(%arg0: i32) -> (i32, i32) {
    %c0_i32 = arith.constant 0 : i32
    %c0_i32_0 = arith.constant 0 : i32
    %c0_i32_1 = arith.constant 0 : i32
    return %c0_i32, %c0_i32_0 : i32, i32
  }
  func.func @transform_8(%arg0: i32) -> (i32, i32) {
    %c0_i32 = arith.constant 0 : i32
    %c0_i32_0 = arith.constant 0 : i32
    %c0_i32_1 = arith.constant 0 : i32
    return %c0_i32, %c0_i32_0 : i32, i32
  }
  func.func @transform_9(%arg0: i32) -> (i32, i32) {
    %c0_i32 = arith.constant 0 : i32
    %c0_i32_0 = arith.constant 0 : i32
    %c0_i32_1 = arith.constant 0 : i32
    return %c0_i32, %c0_i32_0 : i32, i32
  }
  func.func @transform_10(%arg0: i32) -> (i32, i32) {
    %c0_i32 = arith.constant 0 : i32
    %c0_i32_0 = arith.constant 0 : i32
    %c0_i32_1 = arith.constant 0 : i32
    return %c0_i32, %c0_i32_0 : i32, i32
  }
  func.func @transform_11(%arg0: i32) -> (i32, i32) {
    %c0_i32 = arith.constant 0 : i32
    %c0_i32_0 = arith.constant 0 : i32
    %c0_i32_1 = arith.constant 0 : i32
    return %c0_i32, %c0_i32_0 : i32, i32
  }
  func.func @transform_12(%arg0: i32) -> (i32, i32) {
    %c0_i32 = arith.constant 0 : i32
    %c0_i32_0 = arith.constant 0 : i32
    %c0_i32_1 = arith.constant 0 : i32
    return %c0_i32, %c0_i32_0 : i32, i32
  }
  func.func @transform_13(%arg0: i32) -> (i32, i32) {
    %c0_i32 = arith.constant 0 : i32
    %c0_i32_0 = arith.constant 0 : i32
    %c0_i32_1 = arith.constant 0 : i32
    return %c0_i32, %c0_i32_0 : i32, i32
  }
  func.func @transform_14(%arg0: i32) -> (i32, i32) {
    %c0_i32 = arith.constant 0 : i32
    %c0_i32_0 = arith.constant 0 : i32
    %c0_i32_1 = arith.constant 0 : i32
    return %c0_i32, %c0_i32_0 : i32, i32
  }
  func.func @transform_15(%arg0: i32) -> (i32, i32) {
    %c0_i32 = arith.constant 0 : i32
    %c0_i32_0 = arith.constant 0 : i32
    %c0_i32_1 = arith.constant 0 : i32
    return %c0_i32, %c0_i32_0 : i32, i32
  }
  func.func @transform_16(%arg0: i32) -> (i32, i32, i32) {
    %c0_i32 = arith.constant 0 : i32
    %c0_i32_0 = arith.constant 0 : i32
    %c0_i32_1 = arith.constant 0 : i32
    return %arg0, %c0_i32, %c0_i32_0 : i32, i32, i32
  }
}

</mosaic_0001>

<llo_original>
// kernel: tpu_custom_call.1
$region0: #{tpu_custom_call.1}
  #allocation0 [shape = 'u32[]', space=smem, size = 0x4, offset = 0x4, fixed_abs, tag = 'smem constant byte address 0x4 - core index']
  #allocation1 [shape = 'u32[144,128]{1,0:T(1,128)}', space=vmem, size = 0x12000, scoped, tag = 'internal scratch']
  %s0 = inlined_call_operand.vmem [shape: f32[2,16,32], index: 0, kind: input, shape index: {}]
  %s1 = inlined_call_operand.vmem [shape: f32[2,16,32], index: 1, kind: input, shape index: {}]
  %s2 = inlined_call_operand.vmem [shape: f32[2,16,32], index: 2, kind: input, shape index: {}]
  %s3 = inlined_call_operand.hbm [shape: f32[16,16], index: 3, kind: input, shape index: {}]
  %s4 = inlined_call_operand.hbm [shape: f32[32,96], index: 4, kind: input, shape index: {}]
  %s5 = inlined_call_operand.vmem [shape: f32[1,96], index: 5, kind: input, shape index: {}]
  %s6 = inlined_call_operand.hbm [shape: f32[32,32], index: 6, kind: input, shape index: {}]
  %s7 = inlined_call_operand.vmem [shape: f32[1,32], index: 7, kind: input, shape index: {}]
  %s8 = inlined_call_operand.vmem [shape: f32[1,32], index: 8, kind: input, shape index: {}]
  %s9 = inlined_call_operand.vmem [shape: f32[1,32], index: 9, kind: input, shape index: {}]
  %s10 = inlined_call_operand.hbm [shape: f32[32,64], index: 10, kind: input, shape index: {}]
  %s11 = inlined_call_operand.vmem [shape: f32[1,64], index: 11, kind: input, shape index: {}]
  %s12 = inlined_call_operand.vmem [shape: f32[64,32], index: 12, kind: input, shape index: {}]
  %s13 = inlined_call_operand.vmem [shape: f32[1,32], index: 13, kind: input, shape index: {}]
  %s14 = inlined_call_operand.vmem [shape: f32[1,32], index: 14, kind: input, shape index: {}]
  %s15 = inlined_call_operand.vmem [shape: f32[1,32], index: 15, kind: input, shape index: {}]
  %s16 = inlined_call_operand.hbm [shape: f32[2,16,32], index: 16, kind: output, shape index: {}]
  %s17 = sld [smem:[#allocation0]]
  $region113: #{tpu_custom_call.1} parent=0
    _
  %s19 = ssub.s32 1, %s17
  %s20 = scalar_select 0, %s19, %s17
  $region1: #{tpu_custom_call.1} parent=0
    #allocation2 [shape = 'u8[8192]{0}', space=vmem, size = 0x2000, scoped, tag = 'input window, operand 3, single buffered']
    #allocation3 [shape = 's32[2]{0}', space=sflag, size = 0x8, scoped, tag = 'scoped memory for tpu_custom_call.1']
    #allocation4 [shape = 's32[2]{0}', space=sflag, size = 0x8, scoped, tag = 'scoped memory for tpu_custom_call.1']
    #allocation5 [shape = 'u8[16384]{0}', space=vmem, size = 0x4000, scoped, tag = 'input window, operand 4, single buffered']
    #allocation6 [shape = 's32[1]{0}', space=sflag, size = 0x4, scoped, tag = 'scoped memory for tpu_custom_call.1']
    #allocation7 [shape = 'u8[16384]{0}', space=vmem, size = 0x4000, scoped, tag = 'input window, operand 6, single buffered']
    #allocation8 [shape = 'u8[16384]{0}', space=vmem, size = 0x4000, scoped, tag = 'input window, operand 10, single buffered']
    #allocation9 [shape = 's32[1]{0}', space=sflag, size = 0x4, scoped, tag = 'scoped memory for tpu_custom_call.1']
    #allocation10 [shape = 'u8[16384]{0}', space=vmem, size = 0x4000, scoped, tag = 'output window, operand 0']
    %21 = vsyncpa [#allocation3], 0
    %22 = vsyncpa [#allocation6], 0
    %23 = vsyncpa [#allocation9], 0
    %24 = vsyncpa [#allocation4], 0
    %s25 = scalar_lea.sflag [#allocation4], 1
    %26 = vsyncpa %s25, 0
    loop: start=0, step=1, limit=4
    $region2: #{tpu_custom_call.1} parent=1 // loop_pre_header
      _
    $region3: #{tpu_custom_call.1} parent=1 // loop_header
      %s28 = sphi 0, %s32
      %p29 = scmp.ge.s32.totalorder %s28, 4
      %s38 = sphi 0, %s40
      %s41 = sphi 0, %s38
      %s42 = sphi 0, %s41
      %s58 = sphi 0, %s42
      %s64 = sphi 0, %s66
      %s67 = sphi 0, %s64
      %s68 = sphi 0, %s67
      %s84 = sphi 0, %s68
      %s90 = sphi 0, %s92
      %s93 = sphi 0, %s90
      %s94 = sphi 0, %s93
      %s110 = sphi 0, %s94
      %s114 = sphi 0, %s114
      %s116 = sphi 0, %s114
      %s117 = sphi 0, %s116
      %s131 = sphi 0, %s117
      %s135 = sphi 0, %s135
      %s137 = sphi 0, %s135
      %s138 = sphi 0, %s137
      %s152 = sphi 0, %s138
      %s156 = sphi 0, %s156
      %s158 = sphi 0, %s156
      %s159 = sphi 0, %s158
      %s173 = sphi 0, %s159
      %s177 = sphi 0, %s177
      %s179 = sphi 0, %s177
      %s180 = sphi 0, %s179
      %s194 = sphi 0, %s180
      %s198 = sphi 0, %s198
      %s200 = sphi 0, %s198
      %s201 = sphi 0, %s200
      %s215 = sphi 0, %s201
      %s219 = sphi 0, %s219
      %s221 = sphi 0, %s219
      %s222 = sphi 0, %s221
      %s236 = sphi 0, %s222
      %s240 = sphi 0, %s240
      %s242 = sphi 0, %s240
      %s243 = sphi 0, %s242
      %s257 = sphi 0, %s243
      %s261 = sphi 0, %s261
      %s263 = sphi 0, %s261
      %s264 = sphi 0, %s263
      %s278 = sphi 0, %s264
      %s282 = sphi 0, %s282
      %s284 = sphi 0, %s282
      %s285 = sphi 0, %s284
      %s299 = sphi 0, %s285
      %s303 = sphi 0, %s303
      %s305 = sphi 0, %s303
      %s306 = sphi 0, %s305
      %s320 = sphi 0, %s306
      %s324 = sphi 0, %s324
      %s326 = sphi 0, %s324
      %s327 = sphi 0, %s326
      %s341 = sphi 0, %s327
      %s345 = sphi 0, %s345
      %s347 = sphi 0, %s345
      %s348 = sphi 0, %s347
      %s362 = sphi 0, %s348
      %s366 = sphi 0, %s366
      %s368 = sphi 0, %s366
      %s369 = sphi 0, %s368
      %s383 = sphi 0, %s369
      %s389 = sphi 0, %s391
      %s392 = sphi 0, %s389
      %s393 = sphi 0, %s392
      %s409 = sphi 0, %s393
    $region4: #{tpu_custom_call.1} parent=1 // loop_header_branch
      %31 = sbr.rel (%p29) target = $region8
    $region5: #{tpu_custom_call.1} parent=1 // loop_body
      %s33 = ssub.s32 %s28, 1
      %s34 = ssub.s32 %s28, 2
      %s35 = sadd.s32 %s28, 1
      %s36 = ssub.s32 %s28, %s35
      %p37 = scmp.eq.s32.totalorder %s36, 0
      %s39 = sadd.s32 %s38, 1
      %s40 = scalar_select %p37, %s38, %s39
      %p43 = pneg %p37
      %p44 = scmp.eq.s32.totalorder %s28, 1
      %p45 = por %p43, %p44
      %p46 = scmp.ne.s32.totalorder %s38, %s41
      %p47 = scmp.eq.s32.totalorder %s28, 0
      %p48 = por %p46, %p47
      %p49 = scmp.ne.s32.totalorder %s38, %s41
      %p50 = scmp.eq.s32.totalorder %s33, 1
      %p51 = por %p49, %p50
      %p52 = scmp.ne.s32.totalorder %s41, %s42
      %p53 = scmp.eq.s32.totalorder %s33, 0
      %p54 = por %p52, %p53
      %p55 = scmp.ne.s32.totalorder %s41, %s42
      %p56 = scmp.eq.s32.totalorder %s34, 1
      %p57 = por %p55, %p56
      %p59 = scmp.ne.s32.totalorder %s42, %s58
      %p60 = scmp.eq.s32.totalorder %s34, 0
      %p61 = por %p59, %p60
      %s62 = ssub.s32 %s28, %s35
      %p63 = scmp.eq.s32.totalorder %s62, 0
      %s65 = sadd.s32 %s64, 1
      %s66 = scalar_select %p63, %s64, %s65
      %p69 = pneg %p63
      %p70 = scmp.eq.s32.totalorder %s28, 1
      %p71 = por %p69, %p70
      %p72 = scmp.ne.s32.totalorder %s64, %s67
      %p73 = scmp.eq.s32.totalorder %s28, 0
      %p74 = por %p72, %p73
      %p75 = scmp.ne.s32.totalorder %s64, %s67
      %p76 = scmp.eq.s32.totalorder %s33, 1
      %p77 = por %p75, %p76
      %p78 = scmp.ne.s32.totalorder %s67, %s68
      %p79 = scmp.eq.s32.totalorder %s33, 0
      %p80 = por %p78, %p79
      %p81 = scmp.ne.s32.totalorder %s67, %s68
      %p82 = scmp.eq.s32.totalorder %s34, 1
      %p83 = por %p81, %p82
      %p85 = scmp.ne.s32.totalorder %s68, %s84
      %p86 = scmp.eq.s32.totalorder %s34, 0
      %p87 = por %p85, %p86
      %s88 = ssub.s32 %s28, %s35
      %p89 = scmp.eq.s32.totalorder %s88, 0
      %s91 = sadd.s32 %s90, 1
      %s92 = scalar_select %p89, %s90, %s91
      %p95 = pneg %p89
      %p96 = scmp.eq.s32.totalorder %s28, 1
      %p97 = por %p95, %p96
      %p98 = scmp.ne.s32.totalorder %s90, %s93
      %p99 = scmp.eq.s32.totalorder %s28, 0
      %p100 = por %p98, %p99
      %p101 = scmp.ne.s32.totalorder %s90, %s93
      %p102 = scmp.eq.s32.totalorder %s33, 1
      %p103 = por %p101, %p102
      %p104 = scmp.ne.s32.totalorder %s93, %s94
      %p105 = scmp.eq.s32.totalorder %s33, 0
      %p106 = por %p104, %p105
      %p107 = scmp.ne.s32.totalorder %s93, %s94
      %p108 = scmp.eq.s32.totalorder %s34, 1
      %p109 = por %p107, %p108
      %p111 = scmp.ne.s32.totalorder %s94, %s110
      %p112 = scmp.eq.s32.totalorder %s34, 0
      %p113 = por %p111, %p112
      %s115 = sadd.s32 %s114, 1
      %p118 = scmp.eq.s32.totalorder %s28, 1
      %p119 = scmp.ne.s32.totalorder %s114, %s116
      %p120 = scmp.eq.s32.totalorder %s28, 0
      %p121 = por %p119, %p120
      %p122 = scmp.ne.s32.totalorder %s114, %s116
      %p123 = scmp.eq.s32.totalorder %s33, 1
      %p124 = por %p122, %p123
      %p125 = scmp.ne.s32.totalorder %s116, %s117
      %p126 = scmp.eq.s32.totalorder %s33, 0
      %p127 = por %p125, %p126
      %p128 = scmp.ne.s32.totalorder %s116, %s117
      %p129 = scmp.eq.s32.totalorder %s34, 1
      %p130 = por %p128, %p129
      %p132 = scmp.ne.s32.totalorder %s117, %s131
      %p133 = scmp.eq.s32.totalorder %s34, 0
      %p134 = por %p132, %p133
      %s136 = sadd.s32 %s135, 1
      %p139 = scmp.eq.s32.totalorder %s28, 1
      %p140 = scmp.ne.s32.totalorder %s135, %s137
      %p141 = scmp.eq.s32.totalorder %s28, 0
      %p142 = por %p140, %p141
      %p143 = scmp.ne.s32.totalorder %s135, %s137
      %p144 = scmp.eq.s32.totalorder %s33, 1
      %p145 = por %p143, %p144
      %p146 = scmp.ne.s32.totalorder %s137, %s138
      %p147 = scmp.eq.s32.totalorder %s33, 0
      %p148 = por %p146, %p147
      %p149 = scmp.ne.s32.totalorder %s137, %s138
      %p150 = scmp.eq.s32.totalorder %s34, 1
      %p151 = por %p149, %p150
      %p153 = scmp.ne.s32.totalorder %s138, %s152
      %p154 = scmp.eq.s32.totalorder %s34, 0
      %p155 = por %p153, %p154
      %s157 = sadd.s32 %s156, 1
      %p160 = scmp.eq.s32.totalorder %s28, 1
      %p161 = scmp.ne.s32.totalorder %s156, %s158
      %p162 = scmp.eq.s32.totalorder %s28, 0
      %p163 = por %p161, %p162
      %p164 = scmp.ne.s32.totalorder %s156, %s158
      %p165 = scmp.eq.s32.totalorder %s33, 1
      %p166 = por %p164, %p165
      %p167 = scmp.ne.s32.totalorder %s158, %s159
      %p168 = scmp.eq.s32.totalorder %s33, 0
      %p169 = por %p167, %p168
      %p170 = scmp.ne.s32.totalorder %s158, %s159
      %p171 = scmp.eq.s32.totalorder %s34, 1
      %p172 = por %p170, %p171
      %p174 = scmp.ne.s32.totalorder %s159, %s173
      %p175 = scmp.eq.s32.totalorder %s34, 0
      %p176 = por %p174, %p175
      %s178 = sadd.s32 %s177, 1
      %p181 = scmp.eq.s32.totalorder %s28, 1
      %p182 = scmp.ne.s32.totalorder %s177, %s179
      %p183 = scmp.eq.s32.totalorder %s28, 0
      %p184 = por %p182, %p183
      %p185 = scmp.ne.s32.totalorder %s177, %s179
      %p186 = scmp.eq.s32.totalorder %s33, 1
      %p187 = por %p185, %p186
      %p188 = scmp.ne.s32.totalorder %s179, %s180
      %p189 = scmp.eq.s32.totalorder %s33, 0
      %p190 = por %p188, %p189
      %p191 = scmp.ne.s32.totalorder %s179, %s180
      %p192 = scmp.eq.s32.totalorder %s34, 1
      %p193 = por %p191, %p192
      %p195 = scmp.ne.s32.totalorder %s180, %s194
      %p196 = scmp.eq.s32.totalorder %s34, 0
      %p197 = por %p195, %p196
      %s199 = sadd.s32 %s198, 1
      %p202 = scmp.eq.s32.totalorder %s28, 1
      %p203 = scmp.ne.s32.totalorder %s198, %s200
      %p204 = scmp.eq.s32.totalorder %s28, 0
      %p205 = por %p203, %p204
      %p206 = scmp.ne.s32.totalorder %s198, %s200
      %p207 = scmp.eq.s32.totalorder %s33, 1
      %p208 = por %p206, %p207
      %p209 = scmp.ne.s32.totalorder %s200, %s201
      %p210 = scmp.eq.s32.totalorder %s33, 0
      %p211 = por %p209, %p210
      %p212 = scmp.ne.s32.totalorder %s200, %s201
      %p213 = scmp.eq.s32.totalorder %s34, 1
      %p214 = por %p212, %p213
      %p216 = scmp.ne.s32.totalorder %s201, %s215
      %p217 = scmp.eq.s32.totalorder %s34, 0
      %p218 = por %p216, %p217
      %s220 = sadd.s32 %s219, 1
      %p223 = scmp.eq.s32.totalorder %s28, 1
      %p224 = scmp.ne.s32.totalorder %s219, %s221
      %p225 = scmp.eq.s32.totalorder %s28, 0
      %p226 = por %p224, %p225
      %p227 = scmp.ne.s32.totalorder %s219, %s221
      %p228 = scmp.eq.s32.totalorder %s33, 1
      %p229 = por %p227, %p228
      %p230 = scmp.ne.s32.totalorder %s221, %s222
      %p231 = scmp.eq.s32.totalorder %s33, 0
      %p232 = por %p230, %p231
      %p233 = scmp.ne.s32.totalorder %s221, %s222
      %p234 = scmp.eq.s32.totalorder %s34, 1
      %p235 = por %p233, %p234
      %p237 = scmp.ne.s32.totalorder %s222, %s236
      %p238 = scmp.eq.s32.totalorder %s34, 0
      %p239 = por %p237, %p238
      %s241 = sadd.s32 %s240, 1
      %p244 = scmp.eq.s32.totalorder %s28, 1
      %p245 = scmp.ne.s32.totalorder %s240, %s242
      %p246 = scmp.eq.s32.totalorder %s28, 0
      %p247 = por %p245, %p246
      %p248 = scmp.ne.s32.totalorder %s240, %s242
      %p249 = scmp.eq.s32.totalorder %s33, 1
      %p250 = por %p248, %p249
      %p251 = scmp.ne.s32.totalorder %s242, %s243
      %p252 = scmp.eq.s32.totalorder %s33, 0
      %p253 = por %p251, %p252
      %p254 = scmp.ne.s32.totalorder %s242, %s243
      %p255 = scmp.eq.s32.totalorder %s34, 1
      %p256 = por %p254, %p255
      %p258 = scmp.ne.s32.totalorder %s243, %s257
      %p259 = scmp.eq.s32.totalorder %s34, 0
      %p260 = por %p258, %p259
      %s262 = sadd.s32 %s261, 1
      %p265 = scmp.eq.s32.totalorder %s28, 1
      %p266 = scmp.ne.s32.totalorder %s261, %s263
      %p267 = scmp.eq.s32.totalorder %s28, 0
      %p268 = por %p266, %p267
      %p269 = scmp.ne.s32.totalorder %s261, %s263
      %p270 = scmp.eq.s32.totalorder %s33, 1
      %p271 = por %p269, %p270
      %p272 = scmp.ne.s32.totalorder %s263, %s264
      %p273 = scmp.eq.s32.totalorder %s33, 0
      %p274 = por %p272, %p273
      %p275 = scmp.ne.s32.totalorder %s263, %s264
      %p276 = scmp.eq.s32.totalorder %s34, 1
      %p277 = por %p275, %p276
      %p279 = scmp.ne.s32.totalorder %s264, %s278
      %p280 = scmp.eq.s32.totalorder %s34, 0
      %p281 = por %p279, %p280
      %s283 = sadd.s32 %s282, 1
      %p286 = scmp.eq.s32.totalorder %s28, 1
      %p287 = scmp.ne.s32.totalorder %s282, %s284
      %p288 = scmp.eq.s32.totalorder %s28, 0
      %p289 = por %p287, %p288
      %p290 = scmp.ne.s32.totalorder %s282, %s284
      %p291 = scmp.eq.s32.totalorder %s33, 1
      %p292 = por %p290, %p291
      %p293 = scmp.ne.s32.totalorder %s284, %s285
      %p294 = scmp.eq.s32.totalorder %s33, 0
      %p295 = por %p293, %p294
      %p296 = scmp.ne.s32.totalorder %s284, %s285
      %p297 = scmp.eq.s32.totalorder %s34, 1
      %p298 = por %p296, %p297
      %p300 = scmp.ne.s32.totalorder %s285, %s299
      %p301 = scmp.eq.s32.totalorder %s34, 0
      %p302 = por %p300, %p301
      %s304 = sadd.s32 %s303, 1
      %p307 = scmp.eq.s32.totalorder %s28, 1
      %p308 = scmp.ne.s32.totalorder %s303, %s305
      %p309 = scmp.eq.s32.totalorder %s28, 0
      %p310 = por %p308, %p309
      %p311 = scmp.ne.s32.totalorder %s303, %s305
      %p312 = scmp.eq.s32.totalorder %s33, 1
      %p313 = por %p311, %p312
      %p314 = scmp.ne.s32.totalorder %s305, %s306
      %p315 = scmp.eq.s32.totalorder %s33, 0
      %p316 = por %p314, %p315
      %p317 = scmp.ne.s32.totalorder %s305, %s306
      %p318 = scmp.eq.s32.totalorder %s34, 1
      %p319 = por %p317, %p318
      %p321 = scmp.ne.s32.totalorder %s306, %s320
      %p322 = scmp.eq.s32.totalorder %s34, 0
      %p323 = por %p321, %p322
      %s325 = sadd.s32 %s324, 1
      %p328 = scmp.eq.s32.totalorder %s28, 1
      %p329 = scmp.ne.s32.totalorder %s324, %s326
      %p330 = scmp.eq.s32.totalorder %s28, 0
      %p331 = por %p329, %p330
      %p332 = scmp.ne.s32.totalorder %s324, %s326
      %p333 = scmp.eq.s32.totalorder %s33, 1
      %p334 = por %p332, %p333
      %p335 = scmp.ne.s32.totalorder %s326, %s327
      %p336 = scmp.eq.s32.totalorder %s33, 0
      %p337 = por %p335, %p336
      %p338 = scmp.ne.s32.totalorder %s326, %s327
      %p339 = scmp.eq.s32.totalorder %s34, 1
      %p340 = por %p338, %p339
      %p342 = scmp.ne.s32.totalorder %s327, %s341
      %p343 = scmp.eq.s32.totalorder %s34, 0
      %p344 = por %p342, %p343
      %s346 = sadd.s32 %s345, 1
      %p349 = scmp.eq.s32.totalorder %s28, 1
      %p350 = scmp.ne.s32.totalorder %s345, %s347
      %p351 = scmp.eq.s32.totalorder %s28, 0
      %p352 = por %p350, %p351
      %p353 = scmp.ne.s32.totalorder %s345, %s347
      %p354 = scmp.eq.s32.totalorder %s33, 1
      %p355 = por %p353, %p354
      %p356 = scmp.ne.s32.totalorder %s347, %s348
      %p357 = scmp.eq.s32.totalorder %s33, 0
      %p358 = por %p356, %p357
      %p359 = scmp.ne.s32.totalorder %s347, %s348
      %p360 = scmp.eq.s32.totalorder %s34, 1
      %p361 = por %p359, %p360
      %p363 = scmp.ne.s32.totalorder %s348, %s362
      %p364 = scmp.eq.s32.totalorder %s34, 0
      %p365 = por %p363, %p364
      %s367 = sadd.s32 %s366, 1
      %p370 = scmp.eq.s32.totalorder %s28, 1
      %p371 = scmp.ne.s32.totalorder %s366, %s368
      %p372 = scmp.eq.s32.totalorder %s28, 0
      %p373 = por %p371, %p372
      %p374 = scmp.ne.s32.totalorder %s366, %s368
      %p375 = scmp.eq.s32.totalorder %s33, 1
      %p376 = por %p374, %p375
      %p377 = scmp.ne.s32.totalorder %s368, %s369
      %p378 = scmp.eq.s32.totalorder %s33, 0
      %p379 = por %p377, %p378
      %p380 = scmp.ne.s32.totalorder %s368, %s369
      %p381 = scmp.eq.s32.totalorder %s34, 1
      %p382 = por %p380, %p381
      %p384 = scmp.ne.s32.totalorder %s369, %s383
      %p385 = scmp.eq.s32.totalorder %s34, 0
      %p386 = por %p384, %p385
      %s387 = ssub.s32 %s28, %s35
      %p388 = scmp.eq.s32.totalorder %s387, 0
      %s390 = sadd.s32 %s389, 1
      %s391 = scalar_select %p388, %s389, %s390
      %p394 = pneg %p388
      %p395 = scmp.eq.s32.totalorder %s28, 1
      %p396 = por %p394, %p395
      %p397 = scmp.ne.s32.totalorder %s389, %s392
      %p398 = scmp.eq.s32.totalorder %s28, 0
      %p399 = por %p397, %p398
      %p400 = scmp.ne.s32.totalorder %s389, %s392
      %p401 = scmp.eq.s32.totalorder %s33, 1
      %p402 = por %p400, %p401
      %p403 = scmp.ne.s32.totalorder %s392, %s393
      %p404 = scmp.eq.s32.totalorder %s33, 0
      %p405 = por %p403, %p404
      %p406 = scmp.ne.s32.totalorder %s392, %s393
      %p407 = scmp.eq.s32.totalorder %s34, 1
      %p408 = por %p406, %p407
      %p410 = scmp.ne.s32.totalorder %s393, %s409
      %p411 = scmp.eq.s32.totalorder %s34, 0
      %p412 = por %p410, %p411
      %p413 = scmp.le.s32.totalorder 1, %s28
      %p414 = scmp.lt.s32.totalorder %s28, 3
      %p415 = pnand %p413, %p414
      %p416 = pneg %p415
      // Predicated region
      $region9: #{tpu_custom_call.1} parent=5 // pred_check
        _
      $region10: #{tpu_custom_call.1} parent=5 // pred_check_branch
        %418 = sbr.rel (%p415) target = $region12
      $region11: #{tpu_custom_call.1} parent=5 // pred_region
        %s419 = ssub.s32 %s28, 1
        // Predicated region
        $region13: #{tpu_custom_call.1} parent=11 // pred_check
          %p420 = pneg %p127
        $region14: #{tpu_custom_call.1} parent=11 // pred_check_branch
          %422 = sbr.rel (%p420) target = $region16
        $region15: #{tpu_custom_call.1} parent=11 // pred_region
          %s424 = ssub.s32 256, 256
          %425 = vsyncadd [#allocation3], %s424
          %s426 = sshll.u32 [#allocation2], 4
          %s427 = int_to_ptr.vmem [resolvable:$true] %s426
          %432 = dma.hbm_to_vmem [thread:$0]  %s3, 256, %s427, [#allocation3], 128, 128, 8
        $region16: #{tpu_custom_call.1} parent=11 // pred_fallthru
          _
        // Predicated region
        $region17: #{tpu_custom_call.1} parent=11 // pred_check
          %p433 = pneg %p148
        $region18: #{tpu_custom_call.1} parent=11 // pred_check_branch
          %435 = sbr.rel (%p433) target = $region20
        $region19: #{tpu_custom_call.1} parent=11 // pred_region
          %s437 = ssub.s32 512, 512
          %438 = vsyncadd [#allocation6], %s437
          %s439 = sshll.u32 [#allocation5], 4
          %s440 = int_to_ptr.vmem [resolvable:$true] %s439
          %445 = dma.hbm_to_vmem [thread:$0]  %s4, 512, %s440, [#allocation6], 128, 128, 8
        $region20: #{tpu_custom_call.1} parent=11 // pred_fallthru
          _
        // Predicated region
        $region21: #{tpu_custom_call.1} parent=11 // pred_check
          %p446 = pneg %p169
        $region22: #{tpu_custom_call.1} parent=11 // pred_check_branch
          %448 = sbr.rel (%p446) target = $region24
        $region23: #{tpu_custom_call.1} parent=11 // pred_region
          _
        $region24: #{tpu_custom_call.1} parent=11 // pred_fallthru
          _
        // Predicated region
        $region25: #{tpu_custom_call.1} parent=11 // pred_check
          %p449 = pneg %p190
        $region26: #{tpu_custom_call.1} parent=11 // pred_check_branch
          %451 = sbr.rel (%p449) target = $region28
        $region27: #{tpu_custom_call.1} parent=11 // pred_region
          %s453 = ssub.s32 512, 512
          %454 = vsyncadd [#allocation6], %s453
          %s455 = sshll.u32 [#allocation7], 4
          %s456 = int_to_ptr.vmem [resolvable:$true] %s455
          %461 = dma.hbm_to_vmem [thread:$0]  %s6, 512, %s456, [#allocation6], 128, 128, 8
        $region28: #{tpu_custom_call.1} parent=11 // pred_fallthru
          _
        // Predicated region
        $region29: #{tpu_custom_call.1} parent=11 // pred_check
          %p462 = pneg %p211
        $region30: #{tpu_custom_call.1} parent=11 // pred_check_branch
          %464 = sbr.rel (%p462) target = $region32
        $region31: #{tpu_custom_call.1} parent=11 // pred_region
          _
        $region32: #{tpu_custom_call.1} parent=11 // pred_fallthru
          _
        // Predicated region
        $region33: #{tpu_custom_call.1} parent=11 // pred_check
          %p465 = pneg %p232
        $region34: #{tpu_custom_call.1} parent=11 // pred_check_branch
          %467 = sbr.rel (%p465) target = $region36
        $region35: #{tpu_custom_call.1} parent=11 // pred_region
          _
        $region36: #{tpu_custom_call.1} parent=11 // pred_fallthru
          _
        // Predicated region
        $region37: #{tpu_custom_call.1} parent=11 // pred_check
          %p468 = pneg %p253
        $region38: #{tpu_custom_call.1} parent=11 // pred_check_branch
          %470 = sbr.rel (%p468) target = $region40
        $region39: #{tpu_custom_call.1} parent=11 // pred_region
          _
        $region40: #{tpu_custom_call.1} parent=11 // pred_fallthru
          _
        // Predicated region
        $region41: #{tpu_custom_call.1} parent=11 // pred_check
          %p471 = pneg %p274
        $region42: #{tpu_custom_call.1} parent=11 // pred_check_branch
          %473 = sbr.rel (%p471) target = $region44
        $region43: #{tpu_custom_call.1} parent=11 // pred_region
          %s475 = ssub.s32 512, 512
          %476 = vsyncadd [#allocation9], %s475
          %s477 = sshll.u32 [#allocation8], 4
          %s478 = int_to_ptr.vmem [resolvable:$true] %s477
          %483 = dma.hbm_to_vmem [thread:$0]  %s10, 512, %s478, [#allocation9], 128, 128, 8
        $region44: #{tpu_custom_call.1} parent=11 // pred_fallthru
          _
        // Predicated region
        $region45: #{tpu_custom_call.1} parent=11 // pred_check
          %p484 = pneg %p295
        $region46: #{tpu_custom_call.1} parent=11 // pred_check_branch
          %486 = sbr.rel (%p484) target = $region48
        $region47: #{tpu_custom_call.1} parent=11 // pred_region
          _
        $region48: #{tpu_custom_call.1} parent=11 // pred_fallthru
          _
        // Predicated region
        $region49: #{tpu_custom_call.1} parent=11 // pred_check
          %p487 = pneg %p316
        $region50: #{tpu_custom_call.1} parent=11 // pred_check_branch
          %489 = sbr.rel (%p487) target = $region52
        $region51: #{tpu_custom_call.1} parent=11 // pred_region
          _
        $region52: #{tpu_custom_call.1} parent=11 // pred_fallthru
          _
        // Predicated region
        $region53: #{tpu_custom_call.1} parent=11 // pred_check
          %p490 = pneg %p337
        $region54: #{tpu_custom_call.1} parent=11 // pred_check_branch
          %492 = sbr.rel (%p490) target = $region56
        $region55: #{tpu_custom_call.1} parent=11 // pred_region
          _
        $region56: #{tpu_custom_call.1} parent=11 // pred_fallthru
          _
        // Predicated region
        $region57: #{tpu_custom_call.1} parent=11 // pred_check
          %p493 = pneg %p358
        $region58: #{tpu_custom_call.1} parent=11 // pred_check_branch
          %495 = sbr.rel (%p493) target = $region60
        $region59: #{tpu_custom_call.1} parent=11 // pred_region
          _
        $region60: #{tpu_custom_call.1} parent=11 // pred_fallthru
          _
        // Predicated region
        $region61: #{tpu_custom_call.1} parent=11 // pred_check
          %p496 = pneg %p379
        $region62: #{tpu_custom_call.1} parent=11 // pred_check_branch
          %498 = sbr.rel (%p496) target = $region64
        $region63: #{tpu_custom_call.1} parent=11 // pred_region
          _
        $region64: #{tpu_custom_call.1} parent=11 // pred_fallthru
          _
      $region12: #{tpu_custom_call.1} parent=5 // pred_fallthru
        _
      %p499 = scmp.lt.s32.totalorder %s28, 2
      // Predicated region
      $region65: #{tpu_custom_call.1} parent=5 // pred_check
        %p500 = pneg %p499
      $region66: #{tpu_custom_call.1} parent=5 // pred_check_branch
        %502 = sbr.rel (%p500) target = $region68
      $region67: #{tpu_custom_call.1} parent=5 // pred_region
        // Predicated region
        $region69: #{tpu_custom_call.1} parent=67 // pred_check
          %p503 = pneg %p48
        $region70: #{tpu_custom_call.1} parent=67 // pred_check_branch
          %505 = sbr.rel (%p503) target = $region72
        $region71: #{tpu_custom_call.1} parent=67 // pred_region
          %p506 = scmp.lt.s32.totalorder %s28, 1
          %s507 = scalar_select %p506, %s28, 1
          %s508 = smul.addr %s507, 2
          %s509 = smul.addr %s508, 8
          %s510 = scalar_lea.vmem %s0, %s509
        $region72: #{tpu_custom_call.1} parent=67 // pred_fallthru
          _
        // Predicated region
        $region73: #{tpu_custom_call.1} parent=67 // pred_check
          %p511 = pneg %p74
        $region74: #{tpu_custom_call.1} parent=67 // pred_check_branch
          %513 = sbr.rel (%p511) target = $region76
        $region75: #{tpu_custom_call.1} parent=67 // pred_region
          %p514 = scmp.lt.s32.totalorder %s28, 1
          %s515 = scalar_select %p514, %s28, 1
          %s516 = smul.addr %s515, 2
          %s517 = smul.addr %s516, 8
          %s518 = scalar_lea.vmem %s1, %s517
        $region76: #{tpu_custom_call.1} parent=67 // pred_fallthru
          _
        // Predicated region
        $region77: #{tpu_custom_call.1} parent=67 // pred_check
          %p519 = pneg %p100
        $region78: #{tpu_custom_call.1} parent=67 // pred_check_branch
          %521 = sbr.rel (%p519) target = $region80
        $region79: #{tpu_custom_call.1} parent=67 // pred_region
          %p522 = scmp.lt.s32.totalorder %s28, 1
          %s523 = scalar_select %p522, %s28, 1
          %s524 = smul.addr %s523, 2
          %s525 = smul.addr %s524, 8
          %s526 = scalar_lea.vmem %s2, %s525
        $region80: #{tpu_custom_call.1} parent=67 // pred_fallthru
          _
      $region68: #{tpu_custom_call.1} parent=5 // pred_fallthru
        _
      %p527 = scmp.le.s32.totalorder 1, %s28
      %p528 = scmp.lt.s32.totalorder %s28, 3
      %p529 = pnand %p527, %p528
      %p530 = pneg %p529
      // Predicated region
      $region81: #{tpu_custom_call.1} parent=5 // pred_check
        _
      $region82: #{tpu_custom_call.1} parent=5 // pred_check_branch
        %532 = sbr.rel (%p529) target = $region84
      $region83: #{tpu_custom_call.1} parent=5 // pred_region
        %s533 = ssub.s32 %s28, 1
        // Predicated region
        $region85: #{tpu_custom_call.1} parent=83 // pred_check
          %p534 = pneg %p127
        $region86: #{tpu_custom_call.1} parent=83 // pred_check_branch
          %536 = sbr.rel (%p534) target = $region88
        $region87: #{tpu_custom_call.1} parent=83 // pred_region
          %537 = dma.done [#allocation3], 256
        $region88: #{tpu_custom_call.1} parent=83 // pred_fallthru
          _
        // Predicated region
        $region89: #{tpu_custom_call.1} parent=83 // pred_check
          %p538 = pneg %p148
        $region90: #{tpu_custom_call.1} parent=83 // pred_check_branch
          %540 = sbr.rel (%p538) target = $region92
        $region91: #{tpu_custom_call.1} parent=83 // pred_region
          %541 = dma.done [#allocation6], 512
        $region92: #{tpu_custom_call.1} parent=83 // pred_fallthru
          _
        // Predicated region
        $region93: #{tpu_custom_call.1} parent=83 // pred_check
          %p542 = pneg %p190
        $region94: #{tpu_custom_call.1} parent=83 // pred_check_branch
          %544 = sbr.rel (%p542) target = $region96
        $region95: #{tpu_custom_call.1} parent=83 // pred_region
          %545 = dma.done [#allocation6], 512
        $region96: #{tpu_custom_call.1} parent=83 // pred_fallthru
          _
        // Predicated region
        $region97: #{tpu_custom_call.1} parent=83 // pred_check
          %p546 = pneg %p274
        $region98: #{tpu_custom_call.1} parent=83 // pred_check_branch
          %548 = sbr.rel (%p546) target = $region100
        $region99: #{tpu_custom_call.1} parent=83 // pred_region
          %549 = dma.done [#allocation9], 512
        $region100: #{tpu_custom_call.1} parent=83 // pred_fallthru
          _
        %p550 = scmp.lt.s32.totalorder %s33, 1
        %s551 = scalar_select %p550, %s33, 1
        %s552 = smul.addr %s551, 2
        %s553 = smul.addr %s552, 8
        %s554 = scalar_lea.vmem %s0, %s553
        %p555 = pneg %p54
        %p556 = pneg %p51
        %p557 = scmp.lt.s32.totalorder %s33, 1
        %s558 = scalar_select %p557, %s33, 1
        %s559 = smul.addr %s558, 2
        %s560 = smul.addr %s559, 8
        %s561 = scalar_lea.vmem %s1, %s560
        %p562 = pneg %p80
        %p563 = pneg %p77
        %p564 = scmp.lt.s32.totalorder %s33, 1
        %s565 = scalar_select %p564, %s33, 1
        %s566 = smul.addr %s565, 2
        %s567 = smul.addr %s566, 8
        %s568 = scalar_lea.vmem %s2, %s567
        %p569 = pneg %p106
        %p570 = pneg %p103
        %p571 = pneg %p127
        %p572 = pneg %p124
        %p573 = pneg %p148
        %p574 = pneg %p145
        %p575 = pneg %p169
        %p576 = pneg %p166
        %p577 = pneg %p190
        %p578 = pneg %p187
        %p579 = pneg %p211
        %p580 = pneg %p208
        %p581 = pneg %p232
        %p582 = pneg %p229
        %p583 = pneg %p253
        %p584 = pneg %p250
        %p585 = pneg %p274
        %p586 = pneg %p271
        %p587 = pneg %p295
        %p588 = pneg %p292
        %p589 = pneg %p316
        %p590 = pneg %p313
        %p591 = pneg %p337
        %p592 = pneg %p334
        %p593 = pneg %p358
        %p594 = pneg %p355
        %p595 = pneg %p379
        %p596 = pneg %p376
        %p597 = pneg %p405
        %p598 = pneg %p402
        %s599 = sand.u32 %s392, 1
        %s600 = scalar_lea.sflag [#allocation4], %s599
        %s601 = sand.u32 %s392, 1
        %s602 = smul.addr %s601, 16
        %s603 = scalar_lea.vmem [#allocation10], %s602
        %p604 = scmp.lt.s32.totalorder %s33, 1
        %s605 = scalar_select %p604, %s33, 1
        %s606 = smul.addr %s605, 2
        %s607 = smul.addr %s606, 8
        %s608 = scalar_lea.vmem %s0, %s607
        %p609 = scmp.lt.s32.totalorder %s33, 1
        %s610 = scalar_select %p609, %s33, 1
        %s611 = smul.addr %s610, 2
        %s612 = smul.addr %s611, 8
        %s613 = scalar_lea.vmem %s1, %s612
        %p614 = scmp.lt.s32.totalorder %s33, 1
        %s615 = scalar_select %p614, %s33, 1
        %s616 = smul.addr %s615, 2
        %s617 = smul.addr %s616, 8
        %s618 = scalar_lea.vmem %s2, %s617
        %v619 = vld [vmem:[#allocation5] sm:$0xff]
        %v620 = vld [vmem:[#allocation5 + $0x8] sm:$0xff]
        %v621 = vld [vmem:[#allocation5 + $0x10] sm:$0xff]
        %v622 = vld [vmem:[#allocation5 + $0x18] sm:$0xff]
        %v623 = vld [vmem:[%s5] sm:$0x1]
        %v624 = vld [vmem:[%s618] sm:$0xff]
        %v625 = vld [vmem:[%s618 + $0x8] sm:$0xff]
        %v627 = vlaneseq
        %v628 = vshrl.u32 %v627, 7
        %v629 = vsub.s32 0, %v628
        %v630 = vrot.slane %v623, %v629
        %vm632 = vcmask 261120
        %v634 = vsel %vm632, %v624, 0
        %v637 = vsel %vm632, %v625, 0
        %639 = vmatprep.subr.mxu0 0.0
        %640 = vmatpush1.msra.mxu0 0.0
        %641 = vmatprep.subr.mxu0 0.0
        %642 = vmatpush1.msra.mxu0 0.0
        %643 = vmatprep.subr.mxu0 0.0
        %644 = vmatpush1.msra.mxu0 0.0
        %645 = vmatprep.subr.mxu0 0.0
        %646 = vmatpush1.msra.mxu0 0.0
        %647 = vmatprep.subr.mxu0 0.0
        %648 = vmatpush1.msra.mxu0 0.0
        %649 = vmatprep.subr.mxu0 0.0
        %650 = vmatpush1.msra.mxu0 0.0
        %651 = vmatprep.subr.mxu0 0.0
        %652 = vmatpush1.msra.mxu0 0.0
        %653 = vmatprep.subr.mxu0 0.0
        %654 = vmatpush1.msra.mxu0 0.0
        %655 = vmatprep.subr.mxu0 0.0
        %656 = vmatpush1.msra.mxu0 0.0
        %657 = vmatprep.subr.mxu0 0.0
        %658 = vmatpush1.msra.mxu0 0.0
        %659 = vmatprep.subr.mxu0 0.0
        %660 = vmatpush1.msra.mxu0 0.0
        %661 = vmatprep.subr.mxu0 0.0
        %662 = vmatpush1.msra.mxu0 0.0
        %663 = vmatprep.subr.mxu0 0.0
        %664 = vmatpush1.msra.mxu0 %v622
        %665 = vmatprep.subr.mxu0 0.0
        %666 = vmatpush1.msra.mxu0 %v621
        %667 = vmatprep.subr.mxu0 0.0
        %668 = vmatpush1.msra.mxu0 %v620
        %669 = vmatprep.subr.mxu0 0.0
        %670 = vmatpush1.msra.mxu0 %v619
        %671 = vmatprep.subr.mxu0 0.0
        %672 = vmatpush2.msra.mxu0 0.0
        %673 = vmatprep.subr.mxu0 0.0
        %674 = vmatpush2.msra.mxu0 0.0
        %675 = vmatprep.subr.mxu0 0.0
        %676 = vmatpush2.msra.mxu0 0.0
        %677 = vmatprep.subr.mxu0 0.0
        %678 = vmatpush2.msra.mxu0 0.0
        %679 = vmatprep.subr.mxu0 0.0
        %680 = vmatpush2.msra.mxu0 0.0
        %681 = vmatprep.subr.mxu0 0.0
        %682 = vmatpush2.msra.mxu0 0.0
        %683 = vmatprep.subr.mxu0 0.0
        %684 = vmatpush2.msra.mxu0 0.0
        %685 = vmatprep.subr.mxu0 0.0
        %686 = vmatpush2.msra.mxu0 0.0
        %687 = vmatprep.subr.mxu0 0.0
        %688 = vmatpush2.msra.mxu0 0.0
        %689 = vmatprep.subr.mxu0 0.0
        %690 = vmatpush2.msra.mxu0 0.0
        %691 = vmatprep.subr.mxu0 0.0
        %692 = vmatpush2.msra.mxu0 0.0
        %693 = vmatprep.subr.mxu0 0.0
        %694 = vmatpush2.msra.mxu0 0.0
        %695 = vmatprep.subr.mxu0 0.0
        %696 = vmatpush2.msra.mxu0 0.0
        %697 = vmatprep.subr.mxu0 0.0
        %698 = vmatpush2.msra.mxu0 0.0
        %699 = vmatprep.subr.mxu0 0.0
        %700 = vmatpush2.msra.mxu0 0.0
        %701 = vmatprep.subr.mxu0 0.0
        %702 = vmatpush2.msra.mxu0 0.0
        %703 = vmatprep.mubr.f32.mxu0 0.0
        %704 = vmatmul.mubr.f32.gmra.mxu0 %v634
        %v705 = vpop.f32.mrf.mxu0
        %v706 = vadd.f32 %v630, %v705
        %v707 = vpop.f32.mrf.mxu0
        %708 = vmatprep.mubr.f32.mxu0 0.0
        %709 = vmatmul.mubr.f32.gmra.mxu0 %v637
        %v710 = vpop.f32.mrf.mxu0
        %v711 = vadd.f32 %v630, %v710
        %v712 = vpop.f32.mrf.mxu0
        %713 = vdwg.mxu0
        %v714 = vld [vmem:[%s613] sm:$0xff]
        %v715 = vld [vmem:[%s613 + $0x8] sm:$0xff]
        %720 = vrot.lane.b32.xlu0 %v619, 96
        %v721 = vpop.permute.xlu0 %720
        %722 = vrot.lane.b32.xlu0 %v620, 96
        %v723 = vpop.permute.xlu0 %722
        %724 = vrot.lane.b32.xlu0 %v621, 96
        %v725 = vpop.permute.xlu0 %724
        %726 = vrot.lane.b32.xlu0 %v622, 96
        %v727 = vpop.permute.xlu0 %726
        %732 = vrot.lane.b32.xlu0 %v630, 96
        %v733 = vpop.permute.xlu0 %732
        %v736 = vsel %vm632, %v714, 0
        %v739 = vsel %vm632, %v715, 0
        %741 = vmatprep.subr.mxu0 0.0
        %742 = vmatpush1.msra.mxu0 0.0
        %743 = vmatprep.subr.mxu0 0.0
        %744 = vmatpush1.msra.mxu0 0.0
        %745 = vmatprep.subr.mxu0 0.0
        %746 = vmatpush1.msra.mxu0 0.0
        %747 = vmatprep.subr.mxu0 0.0
        %748 = vmatpush1.msra.mxu0 0.0
        %749 = vmatprep.subr.mxu0 0.0
        %750 = vmatpush1.msra.mxu0 0.0
        %751 = vmatprep.subr.mxu0 0.0
        %752 = vmatpush1.msra.mxu0 0.0
        %753 = vmatprep.subr.mxu0 0.0
        %754 = vmatpush1.msra.mxu0 0.0
        %755 = vmatprep.subr.mxu0 0.0
        %756 = vmatpush1.msra.mxu0 0.0
        %757 = vmatprep.subr.mxu0 0.0
        %758 = vmatpush1.msra.mxu0 0.0
        %759 = vmatprep.subr.mxu0 0.0
        %760 = vmatpush1.msra.mxu0 0.0
        %761 = vmatprep.subr.mxu0 0.0
        %762 = vmatpush1.msra.mxu0 0.0
        %763 = vmatprep.subr.mxu0 0.0
        %764 = vmatpush1.msra.mxu0 0.0
        %765 = vmatprep.subr.mxu0 0.0
        %766 = vmatpush1.msra.mxu0 %v727
        %767 = vmatprep.subr.mxu0 0.0
        %768 = vmatpush1.msra.mxu0 %v725
        %769 = vmatprep.subr.mxu0 0.0
        %770 = vmatpush1.msra.mxu0 %v723
        %771 = vmatprep.subr.mxu0 0.0
        %772 = vmatpush1.msra.mxu0 %v721
        %773 = vmatprep.subr.mxu0 0.0
        %774 = vmatpush2.msra.mxu0 0.0
        %775 = vmatprep.subr.mxu0 0.0
        %776 = vmatpush2.msra.mxu0 0.0
        %777 = vmatprep.subr.mxu0 0.0
        %778 = vmatpush2.msra.mxu0 0.0
        %779 = vmatprep.subr.mxu0 0.0
        %780 = vmatpush2.msra.mxu0 0.0
        %781 = vmatprep.subr.mxu0 0.0
        %782 = vmatpush2.msra.mxu0 0.0
        %783 = vmatprep.subr.mxu0 0.0
        %784 = vmatpush2.msra.mxu0 0.0
        %785 = vmatprep.subr.mxu0 0.0
        %786 = vmatpush2.msra.mxu0 0.0
        %787 = vmatprep.subr.mxu0 0.0
        %788 = vmatpush2.msra.mxu0 0.0
        %789 = vmatprep.subr.mxu0 0.0
        %790 = vmatpush2.msra.mxu0 0.0
        %791 = vmatprep.subr.mxu0 0.0
        %792 = vmatpush2.msra.mxu0 0.0
        %793 = vmatprep.subr.mxu0 0.0
        %794 = vmatpush2.msra.mxu0 0.0
        %795 = vmatprep.subr.mxu0 0.0
        %796 = vmatpush2.msra.mxu0 0.0
        %797 = vmatprep.subr.mxu0 0.0
        %798 = vmatpush2.msra.mxu0 0.0
        %799 = vmatprep.subr.mxu0 0.0
        %800 = vmatpush2.msra.mxu0 0.0
        %801 = vmatprep.subr.mxu0 0.0
        %802 = vmatpush2.msra.mxu0 0.0
        %803 = vmatprep.subr.mxu0 0.0
        %804 = vmatpush2.msra.mxu0 0.0
        %805 = vmatprep.mubr.f32.mxu0 0.0
        %806 = vmatmul.mubr.f32.gmra.mxu0 %v736
        %v807 = vpop.f32.mrf.mxu0
        %v808 = vadd.f32 %v733, %v807
        %v809 = vpop.f32.mrf.mxu0
        %810 = vmatprep.mubr.f32.mxu0 0.0
        %811 = vmatmul.mubr.f32.gmra.mxu0 %v739
        %v812 = vpop.f32.mrf.mxu0
        %v813 = vadd.f32 %v733, %v812
        %v814 = vpop.f32.mrf.mxu0
        %815 = vdwg.mxu0
        %v816 = vld [vmem:[%s608] sm:$0xff]
        %v817 = vld [vmem:[%s608 + $0x8] sm:$0xff]
        %818 = vrot.lane.b32.xlu0 %v619, 64
        %v819 = vpop.permute.xlu0 %818
        %820 = vrot.lane.b32.xlu0 %v620, 64
        %v821 = vpop.permute.xlu0 %820
        %822 = vrot.lane.b32.xlu0 %v621, 64
        %v823 = vpop.permute.xlu0 %822
        %824 = vrot.lane.b32.xlu0 %v622, 64
        %v825 = vpop.permute.xlu0 %824
        %830 = vrot.lane.b32.xlu0 %v630, 64
        %v831 = vpop.permute.xlu0 %830
        %v834 = vsel %vm632, %v816, 0
        %v837 = vsel %vm632, %v817, 0
        %839 = vmatprep.subr.mxu0 0.0
        %840 = vmatpush1.msra.mxu0 0.0
        %841 = vmatprep.subr.mxu0 0.0
        %842 = vmatpush1.msra.mxu0 0.0
        %843 = vmatprep.subr.mxu0 0.0
        %844 = vmatpush1.msra.mxu0 0.0
        %845 = vmatprep.subr.mxu0 0.0
        %846 = vmatpush1.msra.mxu0 0.0
        %847 = vmatprep.subr.mxu0 0.0
        %848 = vmatpush1.msra.mxu0 0.0
        %849 = vmatprep.subr.mxu0 0.0
        %850 = vmatpush1.msra.mxu0 0.0
        %851 = vmatprep.subr.mxu0 0.0
        %852 = vmatpush1.msra.mxu0 0.0
        %853 = vmatprep.subr.mxu0 0.0
        %854 = vmatpush1.msra.mxu0 0.0
        %855 = vmatprep.subr.mxu0 0.0
        %856 = vmatpush1.msra.mxu0 0.0
        %857 = vmatprep.subr.mxu0 0.0
        %858 = vmatpush1.msra.mxu0 0.0
        %859 = vmatprep.subr.mxu0 0.0
        %860 = vmatpush1.msra.mxu0 0.0
        %861 = vmatprep.subr.mxu0 0.0
        %862 = vmatpush1.msra.mxu0 0.0
        %863 = vmatprep.subr.mxu0 0.0
        %864 = vmatpush1.msra.mxu0 %v825
        %865 = vmatprep.subr.mxu0 0.0
        %866 = vmatpush1.msra.mxu0 %v823
        %867 = vmatprep.subr.mxu0 0.0
        %868 = vmatpush1.msra.mxu0 %v821
        %869 = vmatprep.subr.mxu0 0.0
        %870 = vmatpush1.msra.mxu0 %v819
        %871 = vmatprep.subr.mxu0 0.0
        %872 = vmatpush2.msra.mxu0 0.0
        %873 = vmatprep.subr.mxu0 0.0
        %874 = vmatpush2.msra.mxu0 0.0
        %875 = vmatprep.subr.mxu0 0.0
        %876 = vmatpush2.msra.mxu0 0.0
        %877 = vmatprep.subr.mxu0 0.0
        %878 = vmatpush2.msra.mxu0 0.0
        %879 = vmatprep.subr.mxu0 0.0
        %880 = vmatpush2.msra.mxu0 0.0
        %881 = vmatprep.subr.mxu0 0.0
        %882 = vmatpush2.msra.mxu0 0.0
        %883 = vmatprep.subr.mxu0 0.0
        %884 = vmatpush2.msra.mxu0 0.0
        %885 = vmatprep.subr.mxu0 0.0
        %886 = vmatpush2.msra.mxu0 0.0
        %887 = vmatprep.subr.mxu0 0.0
        %888 = vmatpush2.msra.mxu0 0.0
        %889 = vmatprep.subr.mxu0 0.0
        %890 = vmatpush2.msra.mxu0 0.0
        %891 = vmatprep.subr.mxu0 0.0
        %892 = vmatpush2.msra.mxu0 0.0
        %893 = vmatprep.subr.mxu0 0.0
        %894 = vmatpush2.msra.mxu0 0.0
        %895 = vmatprep.subr.mxu0 0.0
        %896 = vmatpush2.msra.mxu0 0.0
        %897 = vmatprep.subr.mxu0 0.0
        %898 = vmatpush2.msra.mxu0 0.0
        %899 = vmatprep.subr.mxu0 0.0
        %900 = vmatpush2.msra.mxu0 0.0
        %901 = vmatprep.subr.mxu0 0.0
        %902 = vmatpush2.msra.mxu0 0.0
        %903 = vmatprep.mubr.f32.mxu0 0.0
        %904 = vmatmul.mubr.f32.gmra.mxu0 %v834
        %v905 = vpop.f32.mrf.mxu0
        %v906 = vadd.f32 %v831, %v905
        %v907 = vpop.f32.mrf.mxu0
        %908 = vmatprep.mubr.f32.mxu0 0.0
        %909 = vmatmul.mubr.f32.gmra.mxu0 %v837
        %v910 = vpop.f32.mrf.mxu0
        %v911 = vadd.f32 %v831, %v910
        %v912 = vpop.f32.mrf.mxu0
        %913 = vdwg.mxu0
        %v914 = vld [vmem:[#allocation2] sm:$0xff]
        %v915 = vld [vmem:[#allocation2 + $0x8] sm:$0xff]
        %v916 = vld [vmem:[#allocation7] sm:$0xff]
        %v917 = vld [vmem:[#allocation7 + $0x8] sm:$0xff]
        %v918 = vld [vmem:[#allocation7 + $0x10] sm:$0xff]
        %v919 = vld [vmem:[#allocation7 + $0x18] sm:$0xff]
        %v920 = vld [vmem:[%s7] sm:$0x1]
        %v921 = vld [vmem:[%s8] sm:$0x1]
        %v922 = vld [vmem:[%s9] sm:$0x1]
        %v923 = vld [vmem:[#allocation8] sm:$0xff]
        %v924 = vld [vmem:[#allocation8 + $0x8] sm:$0xff]
        %v925 = vld [vmem:[#allocation8 + $0x10] sm:$0xff]
        %v926 = vld [vmem:[#allocation8 + $0x18] sm:$0xff]
        %v927 = vld [vmem:[%s11] sm:$0x1]
        %v928 = vld [vmem:[%s12] sm:$0xff]
        %v929 = vld [vmem:[%s12 + $0x8] sm:$0xff]
        %v930 = vld [vmem:[%s12 + $0x10] sm:$0xff]
        %v931 = vld [vmem:[%s12 + $0x18] sm:$0xff]
        %v932 = vld [vmem:[%s12 + $0x20] sm:$0xff]
        %v933 = vld [vmem:[%s12 + $0x28] sm:$0xff]
        %v934 = vld [vmem:[%s12 + $0x30] sm:$0xff]
        %v935 = vld [vmem:[%s12 + $0x38] sm:$0xff]
        %v936 = vld [vmem:[%s13] sm:$0x1]
        %v937 = vld [vmem:[%s14] sm:$0x1]
        %v938 = vld [vmem:[%s15] sm:$0x1]
        %v939 = vmul.f32 %v706, 0.17677669
        %v940 = vmul.f32 %v711, 0.17677669
        %943 = vrot.lane.b32.xlu0 %v939, 120
        %v944 = vpop.permute.xlu0 %943
        %945 = vrot.lane.b32.xlu0 %v940, 120
        %v946 = vpop.permute.xlu0 %945
        %947 = vrot.lane.b32.xlu0 %v939, 112
        %v948 = vpop.permute.xlu0 %947
        %949 = vrot.lane.b32.xlu0 %v940, 112
        %v950 = vpop.permute.xlu0 %949
        %951 = vrot.lane.b32.xlu0 %v939, 104
        %v952 = vpop.permute.xlu0 %951
        %953 = vrot.lane.b32.xlu0 %v940, 104
        %v954 = vpop.permute.xlu0 %953
        %957 = vrot.lane.b32.xlu0 %v808, 120
        %v958 = vpop.permute.xlu0 %957
        %959 = vrot.lane.b32.xlu0 %v813, 120
        %v960 = vpop.permute.xlu0 %959
        %963 = vrot.lane.b32.xlu0 %v808, 112
        %v964 = vpop.permute.xlu0 %963
        %965 = vrot.lane.b32.xlu0 %v813, 112
        %v966 = vpop.permute.xlu0 %965
        %969 = vrot.lane.b32.xlu0 %v808, 104
        %v970 = vpop.permute.xlu0 %969
        %971 = vrot.lane.b32.xlu0 %v813, 104
        %v972 = vpop.permute.xlu0 %971
        %977 = vrot.lane.b32.xlu0 %v906, 120
        %v978 = vpop.permute.xlu0 %977
        %979 = vrot.lane.b32.xlu0 %v911, 120
        %v980 = vpop.permute.xlu0 %979
        %983 = vrot.lane.b32.xlu0 %v906, 112
        %v984 = vpop.permute.xlu0 %983
        %985 = vrot.lane.b32.xlu0 %v911, 112
        %v986 = vpop.permute.xlu0 %985
        %989 = vrot.lane.b32.xlu0 %v906, 104
        %v990 = vpop.permute.xlu0 %989
        %991 = vrot.lane.b32.xlu0 %v911, 104
        %v992 = vpop.permute.xlu0 %991
        %995 = vxpose.xlu0.b32.start [1/16] %v808, 128
        %996 = vxpose.xlu0.b32.cont [2/16] %v813, 128
        %997 = vxpose.xlu0.b32.cont [3/16] 0.0, 128
        %998 = vxpose.xlu0.b32.cont [4/16] 0.0, 128
        %999 = vxpose.xlu0.b32.cont [5/16] 0.0, 128
        %1000 = vxpose.xlu0.b32.cont [6/16] 0.0, 128
        %1001 = vxpose.xlu0.b32.cont [7/16] 0.0, 128
        %1002 = vxpose.xlu0.b32.cont [8/16] 0.0, 128
        %1003 = vxpose.xlu0.b32.cont [9/16] 0.0, 128
        %1004 = vxpose.xlu0.b32.cont [10/16] 0.0, 128
        %1005 = vxpose.xlu0.b32.cont [11/16] 0.0, 128
        %1006 = vxpose.xlu0.b32.cont [12/16] 0.0, 128
        %1007 = vxpose.xlu0.b32.cont [13/16] 0.0, 128
        %1008 = vxpose.xlu0.b32.cont [14/16] 0.0, 128
        %1009 = vxpose.xlu0.b32.cont [15/16] 0.0, 128
        %1010 = vxpose.xlu0.b32.end [16/16] 0.0, 128
        %v1011 = vpop.trf.xlu0
        %v1012 = vpop.trf.xlu0
        %v1013 = vpop.trf.xlu0
        %v1014 = vpop.trf.xlu0
        %v1015 = vpop.trf.xlu0
        %v1016 = vpop.trf.xlu0
        %v1017 = vpop.trf.xlu0
        %v1018 = vpop.trf.xlu0
        %v1019 = vpop.trf.xlu0
        %v1020 = vpop.trf.xlu0
        %v1021 = vpop.trf.xlu0
        %v1022 = vpop.trf.xlu0
        %v1023 = vpop.trf.xlu0
        %v1024 = vpop.trf.xlu0
        %v1025 = vpop.trf.xlu0
        %v1026 = vpop.trf.xlu0
        %1027 = vxpose.xlu0.b32.start [1/16] %v958, 128
        %1028 = vxpose.xlu0.b32.cont [2/16] %v960, 128
        %1029 = vxpose.xlu0.b32.cont [3/16] 0.0, 128
        %1030 = vxpose.xlu0.b32.cont [4/16] 0.0, 128
        %1031 = vxpose.xlu0.b32.cont [5/16] 0.0, 128
        %1032 = vxpose.xlu0.b32.cont [6/16] 0.0, 128
        %1033 = vxpose.xlu0.b32.cont [7/16] 0.0, 128
        %1034 = vxpose.xlu0.b32.cont [8/16] 0.0, 128
        %1035 = vxpose.xlu0.b32.cont [9/16] 0.0, 128
        %1036 = vxpose.xlu0.b32.cont [10/16] 0.0, 128
        %1037 = vxpose.xlu0.b32.cont [11/16] 0.0, 128
        %1038 = vxpose.xlu0.b32.cont [12/16] 0.0, 128
        %1039 = vxpose.xlu0.b32.cont [13/16] 0.0, 128
        %1040 = vxpose.xlu0.b32.cont [14/16] 0.0, 128
        %1041 = vxpose.xlu0.b32.cont [15/16] 0.0, 128
        %1042 = vxpose.xlu0.b32.end [16/16] 0.0, 128
        %v1043 = vpop.trf.xlu0
        %v1044 = vpop.trf.xlu0
        %v1045 = vpop.trf.xlu0
        %v1046 = vpop.trf.xlu0
        %v1047 = vpop.trf.xlu0
        %v1048 = vpop.trf.xlu0
        %v1049 = vpop.trf.xlu0
        %v1050 = vpop.trf.xlu0
        %v1051 = vpop.trf.xlu0
        %v1052 = vpop.trf.xlu0
        %v1053 = vpop.trf.xlu0
        %v1054 = vpop.trf.xlu0
        %v1055 = vpop.trf.xlu0
        %v1056 = vpop.trf.xlu0
        %v1057 = vpop.trf.xlu0
        %v1058 = vpop.trf.xlu0
        %1059 = vxpose.xlu0.b32.start [1/16] %v964, 128
        %1060 = vxpose.xlu0.b32.cont [2/16] %v966, 128
        %1061 = vxpose.xlu0.b32.cont [3/16] 0.0, 128
        %1062 = vxpose.xlu0.b32.cont [4/16] 0.0, 128
        %1063 = vxpose.xlu0.b32.cont [5/16] 0.0, 128
        %1064 = vxpose.xlu0.b32.cont [6/16] 0.0, 128
        %1065 = vxpose.xlu0.b32.cont [7/16] 0.0, 128
        %1066 = vxpose.xlu0.b32.cont [8/16] 0.0, 128
        %1067 = vxpose.xlu0.b32.cont [9/16] 0.0, 128
        %1068 = vxpose.xlu0.b32.cont [10/16] 0.0, 128
        %1069 = vxpose.xlu0.b32.cont [11/16] 0.0, 128
        %1070 = vxpose.xlu0.b32.cont [12/16] 0.0, 128
        %1071 = vxpose.xlu0.b32.cont [13/16] 0.0, 128
        %1072 = vxpose.xlu0.b32.cont [14/16] 0.0, 128
        %1073 = vxpose.xlu0.b32.cont [15/16] 0.0, 128
        %1074 = vxpose.xlu0.b32.end [16/16] 0.0, 128
        %v1075 = vpop.trf.xlu0
        %v1076 = vpop.trf.xlu0
        %v1077 = vpop.trf.xlu0
        %v1078 = vpop.trf.xlu0
        %v1079 = vpop.trf.xlu0
        %v1080 = vpop.trf.xlu0
        %v1081 = vpop.trf.xlu0
        %v1082 = vpop.trf.xlu0
        %v1083 = vpop.trf.xlu0
        %v1084 = vpop.trf.xlu0
        %v1085 = vpop.trf.xlu0
        %v1086 = vpop.trf.xlu0
        %v1087 = vpop.trf.xlu0
        %v1088 = vpop.trf.xlu0
        %v1089 = vpop.trf.xlu0
        %v1090 = vpop.trf.xlu0
        %1091 = vxpose.xlu0.b32.start [1/16] %v970, 128
        %1092 = vxpose.xlu0.b32.cont [2/16] %v972, 128
        %1093 = vxpose.xlu0.b32.cont [3/16] 0.0, 128
        %1094 = vxpose.xlu0.b32.cont [4/16] 0.0, 128
        %1095 = vxpose.xlu0.b32.cont [5/16] 0.0, 128
        %1096 = vxpose.xlu0.b32.cont [6/16] 0.0, 128
        %1097 = vxpose.xlu0.b32.cont [7/16] 0.0, 128
        %1098 = vxpose.xlu0.b32.cont [8/16] 0.0, 128
        %1099 = vxpose.xlu0.b32.cont [9/16] 0.0, 128
        %1100 = vxpose.xlu0.b32.cont [10/16] 0.0, 128
        %1101 = vxpose.xlu0.b32.cont [11/16] 0.0, 128
        %1102 = vxpose.xlu0.b32.cont [12/16] 0.0, 128
        %1103 = vxpose.xlu0.b32.cont [13/16] 0.0, 128
        %1104 = vxpose.xlu0.b32.cont [14/16] 0.0, 128
        %1105 = vxpose.xlu0.b32.cont [15/16] 0.0, 128
        %1106 = vxpose.xlu0.b32.end [16/16] 0.0, 128
        %v1107 = vpop.trf.xlu0
        %v1108 = vpop.trf.xlu0
        %v1109 = vpop.trf.xlu0
        %v1110 = vpop.trf.xlu0
        %v1111 = vpop.trf.xlu0
        %v1112 = vpop.trf.xlu0
        %v1113 = vpop.trf.xlu0
        %v1114 = vpop.trf.xlu0
        %v1115 = vpop.trf.xlu0
        %v1116 = vpop.trf.xlu0
        %v1117 = vpop.trf.xlu0
        %v1118 = vpop.trf.xlu0
        %v1119 = vpop.trf.xlu0
        %v1120 = vpop.trf.xlu0
        %v1121 = vpop.trf.xlu0
        %v1122 = vpop.trf.xlu0
        %vm1123 = vcmask 64512
        %v1124 = vsel %vm1123, %v939, 0
        %v1126 = vsel %vm1123, %v940, 0
        %1128 = vmatprep.subr.mxu0 0.0
        %1129 = vmatpush1.msra.mxu0 0.0
        %1130 = vmatprep.subr.mxu0 0.0
        %1131 = vmatpush1.msra.mxu0 0.0
        %1132 = vmatprep.subr.mxu0 0.0
        %1133 = vmatpush1.msra.mxu0 0.0
        %1134 = vmatprep.subr.mxu0 0.0
        %1135 = vmatpush1.msra.mxu0 0.0
        %1136 = vmatprep.subr.mxu0 0.0
        %1137 = vmatpush1.msra.mxu0 0.0
        %1138 = vmatprep.subr.mxu0 0.0
        %1139 = vmatpush1.msra.mxu0 0.0
        %1140 = vmatprep.subr.mxu0 0.0
        %1141 = vmatpush1.msra.mxu0 0.0
        %1142 = vmatprep.subr.mxu0 0.0
        %1143 = vmatpush1.msra.mxu0 0.0
        %1144 = vmatprep.subr.mxu0 0.0
        %1145 = vmatpush1.msra.mxu0 0.0
        %1146 = vmatprep.subr.mxu0 0.0
        %1147 = vmatpush1.msra.mxu0 0.0
        %1148 = vmatprep.subr.mxu0 0.0
        %1149 = vmatpush1.msra.mxu0 0.0
        %1150 = vmatprep.subr.mxu0 0.0
        %1151 = vmatpush1.msra.mxu0 0.0
        %1152 = vmatprep.subr.mxu0 0.0
        %1153 = vmatpush1.msra.mxu0 0.0
        %1154 = vmatprep.subr.mxu0 0.0
        %1155 = vmatpush1.msra.mxu0 0.0
        %1156 = vmatprep.subr.mxu0 0.0
        %1157 = vmatpush1.msra.mxu0 0.0
        %1158 = vmatprep.subr.mxu0 0.0
        %1159 = vmatpush1.msra.mxu0 %v1011
        %1160 = vmatprep.subr.mxu0 0.0
        %1161 = vmatpush2.msra.mxu0 0.0
        %1162 = vmatprep.subr.mxu0 0.0
        %1163 = vmatpush2.msra.mxu0 0.0
        %1164 = vmatprep.subr.mxu0 0.0
        %1165 = vmatpush2.msra.mxu0 0.0
        %1166 = vmatprep.subr.mxu0 0.0
        %1167 = vmatpush2.msra.mxu0 0.0
        %1168 = vmatprep.subr.mxu0 0.0
        %1169 = vmatpush2.msra.mxu0 0.0
        %1170 = vmatprep.subr.mxu0 0.0
        %1171 = vmatpush2.msra.mxu0 0.0
        %1172 = vmatprep.subr.mxu0 0.0
        %1173 = vmatpush2.msra.mxu0 0.0
        %1174 = vmatprep.subr.mxu0 0.0
        %1175 = vmatpush2.msra.mxu0 0.0
        %1176 = vmatprep.subr.mxu0 0.0
        %1177 = vmatpush2.msra.mxu0 0.0
        %1178 = vmatprep.subr.mxu0 0.0
        %1179 = vmatpush2.msra.mxu0 0.0
        %1180 = vmatprep.subr.mxu0 0.0
        %1181 = vmatpush2.msra.mxu0 0.0
        %1182 = vmatprep.subr.mxu0 0.0
        %1183 = vmatpush2.msra.mxu0 0.0
        %1184 = vmatprep.subr.mxu0 0.0
        %1185 = vmatpush2.msra.mxu0 0.0
        %1186 = vmatprep.subr.mxu0 0.0
        %1187 = vmatpush2.msra.mxu0 0.0
        %1188 = vmatprep.subr.mxu0 0.0
        %1189 = vmatpush2.msra.mxu0 0.0
        %1190 = vmatprep.subr.mxu0 0.0
        %1191 = vmatpush2.msra.mxu0 0.0
        %1192 = vmatprep.mubr.f32.mxu0 0.0
        %1193 = vmatmul.mubr.f32.gmra.mxu0 %v1124
        %v1194 = vpop.f32.mrf.mxu0
        %v1195 = vadd.f32 %v914, %v1194
        %v1196 = vpop.f32.mrf.mxu0
        %1197 = vmatprep.mubr.f32.mxu0 0.0
        %1198 = vmatmul.mubr.f32.gmra.mxu0 %v1126
        %v1199 = vpop.f32.mrf.mxu0
        %v1200 = vadd.f32 %v915, %v1199
        %v1201 = vpop.f32.mrf.mxu0
        %1202 = vdwg.mxu0
        %v1203 = vsel %vm1123, %v944, 0
        %v1205 = vsel %vm1123, %v946, 0
        %1207 = vmatprep.subr.mxu0 0.0
        %1208 = vmatpush1.msra.mxu0 0.0
        %1209 = vmatprep.subr.mxu0 0.0
        %1210 = vmatpush1.msra.mxu0 0.0
        %1211 = vmatprep.subr.mxu0 0.0
        %1212 = vmatpush1.msra.mxu0 0.0
        %1213 = vmatprep.subr.mxu0 0.0
        %1214 = vmatpush1.msra.mxu0 0.0
        %1215 = vmatprep.subr.mxu0 0.0
        %1216 = vmatpush1.msra.mxu0 0.0
        %1217 = vmatprep.subr.mxu0 0.0
        %1218 = vmatpush1.msra.mxu0 0.0
        %1219 = vmatprep.subr.mxu0 0.0
        %1220 = vmatpush1.msra.mxu0 0.0
        %1221 = vmatprep.subr.mxu0 0.0
        %1222 = vmatpush1.msra.mxu0 0.0
        %1223 = vmatprep.subr.mxu0 0.0
        %1224 = vmatpush1.msra.mxu0 0.0
        %1225 = vmatprep.subr.mxu0 0.0
        %1226 = vmatpush1.msra.mxu0 0.0
        %1227 = vmatprep.subr.mxu0 0.0
        %1228 = vmatpush1.msra.mxu0 0.0
        %1229 = vmatprep.subr.mxu0 0.0
        %1230 = vmatpush1.msra.mxu0 0.0
        %1231 = vmatprep.subr.mxu0 0.0
        %1232 = vmatpush1.msra.mxu0 0.0
        %1233 = vmatprep.subr.mxu0 0.0
        %1234 = vmatpush1.msra.mxu0 0.0
        %1235 = vmatprep.subr.mxu0 0.0
        %1236 = vmatpush1.msra.mxu0 0.0
        %1237 = vmatprep.subr.mxu0 0.0
        %1238 = vmatpush1.msra.mxu0 %v1043
        %1239 = vmatprep.subr.mxu0 0.0
        %1240 = vmatpush2.msra.mxu0 0.0
        %1241 = vmatprep.subr.mxu0 0.0
        %1242 = vmatpush2.msra.mxu0 0.0
        %1243 = vmatprep.subr.mxu0 0.0
        %1244 = vmatpush2.msra.mxu0 0.0
        %1245 = vmatprep.subr.mxu0 0.0
        %1246 = vmatpush2.msra.mxu0 0.0
        %1247 = vmatprep.subr.mxu0 0.0
        %1248 = vmatpush2.msra.mxu0 0.0
        %1249 = vmatprep.subr.mxu0 0.0
        %1250 = vmatpush2.msra.mxu0 0.0
        %1251 = vmatprep.subr.mxu0 0.0
        %1252 = vmatpush2.msra.mxu0 0.0
        %1253 = vmatprep.subr.mxu0 0.0
        %1254 = vmatpush2.msra.mxu0 0.0
        %1255 = vmatprep.subr.mxu0 0.0
        %1256 = vmatpush2.msra.mxu0 0.0
        %1257 = vmatprep.subr.mxu0 0.0
        %1258 = vmatpush2.msra.mxu0 0.0
        %1259 = vmatprep.subr.mxu0 0.0
        %1260 = vmatpush2.msra.mxu0 0.0
        %1261 = vmatprep.subr.mxu0 0.0
        %1262 = vmatpush2.msra.mxu0 0.0
        %1263 = vmatprep.subr.mxu0 0.0
        %1264 = vmatpush2.msra.mxu0 0.0
        %1265 = vmatprep.subr.mxu0 0.0
        %1266 = vmatpush2.msra.mxu0 0.0
        %1267 = vmatprep.subr.mxu0 0.0
        %1268 = vmatpush2.msra.mxu0 0.0
        %1269 = vmatprep.subr.mxu0 0.0
        %1270 = vmatpush2.msra.mxu0 0.0
        %1271 = vmatprep.mubr.f32.mxu0 0.0
        %1272 = vmatmul.mubr.f32.gmra.mxu0 %v1203
        %v1273 = vpop.f32.mrf.mxu0
        %v1274 = vadd.f32 %v914, %v1273
        %v1275 = vpop.f32.mrf.mxu0
        %1276 = vmatprep.mubr.f32.mxu0 0.0
        %1277 = vmatmul.mubr.f32.gmra.mxu0 %v1205
        %v1278 = vpop.f32.mrf.mxu0
        %v1279 = vadd.f32 %v915, %v1278
        %v1280 = vpop.f32.mrf.mxu0
        %1281 = vdwg.mxu0
        %v1282 = vsel %vm1123, %v948, 0
        %v1284 = vsel %vm1123, %v950, 0
        %1286 = vmatprep.subr.mxu0 0.0
        %1287 = vmatpush1.msra.mxu0 0.0
        %1288 = vmatprep.subr.mxu0 0.0
        %1289 = vmatpush1.msra.mxu0 0.0
        %1290 = vmatprep.subr.mxu0 0.0
        %1291 = vmatpush1.msra.mxu0 0.0
        %1292 = vmatprep.subr.mxu0 0.0
        %1293 = vmatpush1.msra.mxu0 0.0
        %1294 = vmatprep.subr.mxu0 0.0
        %1295 = vmatpush1.msra.mxu0 0.0
        %1296 = vmatprep.subr.mxu0 0.0
        %1297 = vmatpush1.msra.mxu0 0.0
        %1298 = vmatprep.subr.mxu0 0.0
        %1299 = vmatpush1.msra.mxu0 0.0
        %1300 = vmatprep.subr.mxu0 0.0
        %1301 = vmatpush1.msra.mxu0 0.0
        %1302 = vmatprep.subr.mxu0 0.0
        %1303 = vmatpush1.msra.mxu0 0.0
        %1304 = vmatprep.subr.mxu0 0.0
        %1305 = vmatpush1.msra.mxu0 0.0
        %1306 = vmatprep.subr.mxu0 0.0
        %1307 = vmatpush1.msra.mxu0 0.0
        %1308 = vmatprep.subr.mxu0 0.0
        %1309 = vmatpush1.msra.mxu0 0.0
        %1310 = vmatprep.subr.mxu0 0.0
        %1311 = vmatpush1.msra.mxu0 0.0
        %1312 = vmatprep.subr.mxu0 0.0
        %1313 = vmatpush1.msra.mxu0 0.0
        %1314 = vmatprep.subr.mxu0 0.0
        %1315 = vmatpush1.msra.mxu0 0.0
        %1316 = vmatprep.subr.mxu0 0.0
        %1317 = vmatpush1.msra.mxu0 %v1075
        %1318 = vmatprep.subr.mxu0 0.0
        %1319 = vmatpush2.msra.mxu0 0.0
        %1320 = vmatprep.subr.mxu0 0.0
        %1321 = vmatpush2.msra.mxu0 0.0
        %1322 = vmatprep.subr.mxu0 0.0
        %1323 = vmatpush2.msra.mxu0 0.0
        %1324 = vmatprep.subr.mxu0 0.0
        %1325 = vmatpush2.msra.mxu0 0.0
        %1326 = vmatprep.subr.mxu0 0.0
        %1327 = vmatpush2.msra.mxu0 0.0
        %1328 = vmatprep.subr.mxu0 0.0
        %1329 = vmatpush2.msra.mxu0 0.0
        %1330 = vmatprep.subr.mxu0 0.0
        %1331 = vmatpush2.msra.mxu0 0.0
        %1332 = vmatprep.subr.mxu0 0.0
        %1333 = vmatpush2.msra.mxu0 0.0
        %1334 = vmatprep.subr.mxu0 0.0
        %1335 = vmatpush2.msra.mxu0 0.0
        %1336 = vmatprep.subr.mxu0 0.0
        %1337 = vmatpush2.msra.mxu0 0.0
        %1338 = vmatprep.subr.mxu0 0.0
        %1339 = vmatpush2.msra.mxu0 0.0
        %1340 = vmatprep.subr.mxu0 0.0
        %1341 = vmatpush2.msra.mxu0 0.0
        %1342 = vmatprep.subr.mxu0 0.0
        %1343 = vmatpush2.msra.mxu0 0.0
        %1344 = vmatprep.subr.mxu0 0.0
        %1345 = vmatpush2.msra.mxu0 0.0
        %1346 = vmatprep.subr.mxu0 0.0
        %1347 = vmatpush2.msra.mxu0 0.0
        %1348 = vmatprep.subr.mxu0 0.0
        %1349 = vmatpush2.msra.mxu0 0.0
        %1350 = vmatprep.mubr.f32.mxu0 0.0
        %1351 = vmatmul.mubr.f32.gmra.mxu0 %v1282
        %v1352 = vpop.f32.mrf.mxu0
        %v1353 = vadd.f32 %v914, %v1352
        %v1354 = vpop.f32.mrf.mxu0
        %1355 = vmatprep.mubr.f32.mxu0 0.0
        %1356 = vmatmul.mubr.f32.gmra.mxu0 %v1284
        %v1357 = vpop.f32.mrf.mxu0
        %v1358 = vadd.f32 %v915, %v1357
        %v1359 = vpop.f32.mrf.mxu0
        %1360 = vdwg.mxu0
        %v1361 = vsel %vm1123, %v952, 0
        %v1363 = vsel %vm1123, %v954, 0
        %1365 = vmatprep.subr.mxu0 0.0
        %1366 = vmatpush1.msra.mxu0 0.0
        %1367 = vmatprep.subr.mxu0 0.0
        %1368 = vmatpush1.msra.mxu0 0.0
        %1369 = vmatprep.subr.mxu0 0.0
        %1370 = vmatpush1.msra.mxu0 0.0
        %1371 = vmatprep.subr.mxu0 0.0
        %1372 = vmatpush1.msra.mxu0 0.0
        %1373 = vmatprep.subr.mxu0 0.0
        %1374 = vmatpush1.msra.mxu0 0.0
        %1375 = vmatprep.subr.mxu0 0.0
        %1376 = vmatpush1.msra.mxu0 0.0
        %1377 = vmatprep.subr.mxu0 0.0
        %1378 = vmatpush1.msra.mxu0 0.0
        %1379 = vmatprep.subr.mxu0 0.0
        %1380 = vmatpush1.msra.mxu0 0.0
        %1381 = vmatprep.subr.mxu0 0.0
        %1382 = vmatpush1.msra.mxu0 0.0
        %1383 = vmatprep.subr.mxu0 0.0
        %1384 = vmatpush1.msra.mxu0 0.0
        %1385 = vmatprep.subr.mxu0 0.0
        %1386 = vmatpush1.msra.mxu0 0.0
        %1387 = vmatprep.subr.mxu0 0.0
        %1388 = vmatpush1.msra.mxu0 0.0
        %1389 = vmatprep.subr.mxu0 0.0
        %1390 = vmatpush1.msra.mxu0 0.0
        %1391 = vmatprep.subr.mxu0 0.0
        %1392 = vmatpush1.msra.mxu0 0.0
        %1393 = vmatprep.subr.mxu0 0.0
        %1394 = vmatpush1.msra.mxu0 0.0
        %1395 = vmatprep.subr.mxu0 0.0
        %1396 = vmatpush1.msra.mxu0 %v1107
        %1397 = vmatprep.subr.mxu0 0.0
        %1398 = vmatpush2.msra.mxu0 0.0
        %1399 = vmatprep.subr.mxu0 0.0
        %1400 = vmatpush2.msra.mxu0 0.0
        %1401 = vmatprep.subr.mxu0 0.0
        %1402 = vmatpush2.msra.mxu0 0.0
        %1403 = vmatprep.subr.mxu0 0.0
        %1404 = vmatpush2.msra.mxu0 0.0
        %1405 = vmatprep.subr.mxu0 0.0
        %1406 = vmatpush2.msra.mxu0 0.0
        %1407 = vmatprep.subr.mxu0 0.0
        %1408 = vmatpush2.msra.mxu0 0.0
        %1409 = vmatprep.subr.mxu0 0.0
        %1410 = vmatpush2.msra.mxu0 0.0
        %1411 = vmatprep.subr.mxu0 0.0
        %1412 = vmatpush2.msra.mxu0 0.0
        %1413 = vmatprep.subr.mxu0 0.0
        %1414 = vmatpush2.msra.mxu0 0.0
        %1415 = vmatprep.subr.mxu0 0.0
        %1416 = vmatpush2.msra.mxu0 0.0
        %1417 = vmatprep.subr.mxu0 0.0
        %1418 = vmatpush2.msra.mxu0 0.0
        %1419 = vmatprep.subr.mxu0 0.0
        %1420 = vmatpush2.msra.mxu0 0.0
        %1421 = vmatprep.subr.mxu0 0.0
        %1422 = vmatpush2.msra.mxu0 0.0
        %1423 = vmatprep.subr.mxu0 0.0
        %1424 = vmatpush2.msra.mxu0 0.0
        %1425 = vmatprep.subr.mxu0 0.0
        %1426 = vmatpush2.msra.mxu0 0.0
        %1427 = vmatprep.subr.mxu0 0.0
        %1428 = vmatpush2.msra.mxu0 0.0
        %1429 = vmatprep.mubr.f32.mxu0 0.0
        %1430 = vmatmul.mubr.f32.gmra.mxu0 %v1361
        %v1431 = vpop.f32.mrf.mxu0
        %v1432 = vadd.f32 %v914, %v1431
        %v1433 = vpop.f32.mrf.mxu0
        %1434 = vmatprep.mubr.f32.mxu0 0.0
        %1435 = vmatmul.mubr.f32.gmra.mxu0 %v1363
        %v1436 = vpop.f32.mrf.mxu0
        %v1437 = vadd.f32 %v915, %v1436
        %v1438 = vpop.f32.mrf.mxu0
        %1439 = vdwg.mxu0
        %vm1440 = vcmask 130048
        %v1441 = vsel %vm1440, %v1195, -inf
        %1442 = vmax.xlane.f32.xlu0 %v1441
        %v1443 = vpop.xlane.xlu0 %1442
        %v1444 = vsel %vm1440, %v1200, -inf
        %1445 = vmax.xlane.f32.xlu0 %v1444
        %v1446 = vpop.xlane.xlu0 %1445
        %v1447 = vsel %vm1440, %v1274, -inf
        %1448 = vmax.xlane.f32.xlu0 %v1447
        %v1449 = vpop.xlane.xlu0 %1448
        %v1450 = vsel %vm1440, %v1279, -inf
        %1451 = vmax.xlane.f32.xlu0 %v1450
        %v1452 = vpop.xlane.xlu0 %1451
        %v1453 = vsel %vm1440, %v1353, -inf
        %1454 = vmax.xlane.f32.xlu0 %v1453
        %v1455 = vpop.xlane.xlu0 %1454
        %v1456 = vsel %vm1440, %v1358, -inf
        %1457 = vmax.xlane.f32.xlu0 %v1456
        %v1458 = vpop.xlane.xlu0 %1457
        %v1459 = vsel %vm1440, %v1432, -inf
        %1460 = vmax.xlane.f32.xlu0 %v1459
        %v1461 = vpop.xlane.xlu0 %1460
        %v1462 = vsel %vm1440, %v1437, -inf
        %1463 = vmax.xlane.f32.xlu0 %v1462
        %v1464 = vpop.xlane.xlu0 %1463
        %v1465 = vsub.f32 %v1195, %v1443
        %v1466 = vsub.f32 %v1200, %v1446
        %v1467 = vsub.f32 %v1274, %v1449
        %v1468 = vsub.f32 %v1279, %v1452
        %v1469 = vsub.f32 %v1353, %v1455
        %v1470 = vsub.f32 %v1358, %v1458
        %v1471 = vsub.f32 %v1432, %v1461
        %v1472 = vsub.f32 %v1437, %v1464
        %v1473 = vmul.f32 %v1465, 1.442695
        %v1474 = vpow.pop %v1473
        %v1475 = vmul.f32 %v1466, 1.442695
        %v1476 = vpow.pop %v1475
        %v1477 = vmul.f32 %v1467, 1.442695
        %v1478 = vpow.pop %v1477
        %v1479 = vmul.f32 %v1468, 1.442695
        %v1480 = vpow.pop %v1479
        %v1481 = vmul.f32 %v1469, 1.442695
        %v1482 = vpow.pop %v1481
        %v1483 = vmul.f32 %v1470, 1.442695
        %v1484 = vpow.pop %v1483
        %v1485 = vmul.f32 %v1471, 1.442695
        %v1486 = vpow.pop %v1485
        %v1487 = vmul.f32 %v1472, 1.442695
        %v1488 = vpow.pop %v1487
        %v1489 = vsel %vm1440, %v1474, 0.0
        %1490 = vadd.xlane.f32.xlu0 %v1489
        %v1491 = vpop.xlane.xlu0 %1490
        %v1492 = vsel %vm1440, %v1476, 0.0
        %1493 = vadd.xlane.f32.xlu0 %v1492
        %v1494 = vpop.xlane.xlu0 %1493
        %v1495 = vsel %vm1440, %v1478, 0.0
        %1496 = vadd.xlane.f32.xlu0 %v1495
        %v1497 = vpop.xlane.xlu0 %1496
        %v1498 = vsel %vm1440, %v1480, 0.0
        %1499 = vadd.xlane.f32.xlu0 %v1498
        %v1500 = vpop.xlane.xlu0 %1499
        %v1501 = vsel %vm1440, %v1482, 0.0
        %1502 = vadd.xlane.f32.xlu0 %v1501
        %v1503 = vpop.xlane.xlu0 %1502
        %v1504 = vsel %vm1440, %v1484, 0.0
        %1505 = vadd.xlane.f32.xlu0 %v1504
        %v1506 = vpop.xlane.xlu0 %1505
        %v1507 = vsel %vm1440, %v1486, 0.0
        %1508 = vadd.xlane.f32.xlu0 %v1507
        %v1509 = vpop.xlane.xlu0 %1508
        %v1510 = vsel %vm1440, %v1488, 0.0
        %1511 = vadd.xlane.f32.xlu0 %v1510
        %v1512 = vpop.xlane.xlu0 %1511
        %v1513 = vrcp.pop %v1491
        %v1514 = vrcp.pop %v1494
        %v1515 = vrcp.pop %v1497
        %v1516 = vrcp.pop %v1500
        %v1517 = vrcp.pop %v1503
        %v1518 = vrcp.pop %v1506
        %v1519 = vrcp.pop %v1509
        %v1520 = vrcp.pop %v1512
        %v1521 = vmul.f32 %v1474, %v1513
        %v1522 = vmul.f32 %v1476, %v1514
        %v1523 = vmul.f32 %v1478, %v1515
        %v1524 = vmul.f32 %v1480, %v1516
        %v1525 = vmul.f32 %v1482, %v1517
        %v1526 = vmul.f32 %v1484, %v1518
        %v1527 = vmul.f32 %v1486, %v1519
        %v1528 = vmul.f32 %v1488, %v1520
        %1529 = vxpose.xlu0.b32.start [1/16] %v906, 128
        %1530 = vxpose.xlu0.b32.cont [2/16] %v911, 128
        %1531 = vxpose.xlu0.b32.cont [3/16] 0.0, 128
        %1532 = vxpose.xlu0.b32.cont [4/16] 0.0, 128
        %1533 = vxpose.xlu0.b32.cont [5/16] 0.0, 128
        %1534 = vxpose.xlu0.b32.cont [6/16] 0.0, 128
        %1535 = vxpose.xlu0.b32.cont [7/16] 0.0, 128
        %1536 = vxpose.xlu0.b32.cont [8/16] 0.0, 128
        %1537 = vxpose.xlu0.b32.cont [9/16] 0.0, 128
        %1538 = vxpose.xlu0.b32.cont [10/16] 0.0, 128
        %1539 = vxpose.xlu0.b32.cont [11/16] 0.0, 128
        %1540 = vxpose.xlu0.b32.cont [12/16] 0.0, 128
        %1541 = vxpose.xlu0.b32.cont [13/16] 0.0, 128
        %1542 = vxpose.xlu0.b32.cont [14/16] 0.0, 128
        %1543 = vxpose.xlu0.b32.cont [15/16] 0.0, 128
        %1544 = vxpose.xlu0.b32.end [16/16] 0.0, 128
        %v1545 = vpop.trf.xlu0
        %v1546 = vpop.trf.xlu0
        %v1547 = vpop.trf.xlu0
        %v1548 = vpop.trf.xlu0
        %v1549 = vpop.trf.xlu0
        %v1550 = vpop.trf.xlu0
        %v1551 = vpop.trf.xlu0
        %v1552 = vpop.trf.xlu0
        %v1553 = vpop.trf.xlu0
        %v1554 = vpop.trf.xlu0
        %v1555 = vpop.trf.xlu0
        %v1556 = vpop.trf.xlu0
        %v1557 = vpop.trf.xlu0
        %v1558 = vpop.trf.xlu0
        %v1559 = vpop.trf.xlu0
        %v1560 = vpop.trf.xlu0
        %1561 = vxpose.xlu0.b32.start [1/16] %v978, 128
        %1562 = vxpose.xlu0.b32.cont [2/16] %v980, 128
        %1563 = vxpose.xlu0.b32.cont [3/16] 0.0, 128
        %1564 = vxpose.xlu0.b32.cont [4/16] 0.0, 128
        %1565 = vxpose.xlu0.b32.cont [5/16] 0.0, 128
        %1566 = vxpose.xlu0.b32.cont [6/16] 0.0, 128
        %1567 = vxpose.xlu0.b32.cont [7/16] 0.0, 128
        %1568 = vxpose.xlu0.b32.cont [8/16] 0.0, 128
        %1569 = vxpose.xlu0.b32.cont [9/16] 0.0, 128
        %1570 = vxpose.xlu0.b32.cont [10/16] 0.0, 128
        %1571 = vxpose.xlu0.b32.cont [11/16] 0.0, 128
        %1572 = vxpose.xlu0.b32.cont [12/16] 0.0, 128
        %1573 = vxpose.xlu0.b32.cont [13/16] 0.0, 128
        %1574 = vxpose.xlu0.b32.cont [14/16] 0.0, 128
        %1575 = vxpose.xlu0.b32.cont [15/16] 0.0, 128
        %1576 = vxpose.xlu0.b32.end [16/16] 0.0, 128
        %v1577 = vpop.trf.xlu0
        %v1578 = vpop.trf.xlu0
        %v1579 = vpop.trf.xlu0
        %v1580 = vpop.trf.xlu0
        %v1581 = vpop.trf.xlu0
        %v1582 = vpop.trf.xlu0
        %v1583 = vpop.trf.xlu0
        %v1584 = vpop.trf.xlu0
        %v1585 = vpop.trf.xlu0
        %v1586 = vpop.trf.xlu0
        %v1587 = vpop.trf.xlu0
        %v1588 = vpop.trf.xlu0
        %v1589 = vpop.trf.xlu0
        %v1590 = vpop.trf.xlu0
        %v1591 = vpop.trf.xlu0
        %v1592 = vpop.trf.xlu0
        %1593 = vxpose.xlu0.b32.start [1/16] %v984, 128
        %1594 = vxpose.xlu0.b32.cont [2/16] %v986, 128
        %1595 = vxpose.xlu0.b32.cont [3/16] 0.0, 128
        %1596 = vxpose.xlu0.b32.cont [4/16] 0.0, 128
        %1597 = vxpose.xlu0.b32.cont [5/16] 0.0, 128
        %1598 = vxpose.xlu0.b32.cont [6/16] 0.0, 128
        %1599 = vxpose.xlu0.b32.cont [7/16] 0.0, 128
        %1600 = vxpose.xlu0.b32.cont [8/16] 0.0, 128
        %1601 = vxpose.xlu0.b32.cont [9/16] 0.0, 128
        %1602 = vxpose.xlu0.b32.cont [10/16] 0.0, 128
        %1603 = vxpose.xlu0.b32.cont [11/16] 0.0, 128
        %1604 = vxpose.xlu0.b32.cont [12/16] 0.0, 128
        %1605 = vxpose.xlu0.b32.cont [13/16] 0.0, 128
        %1606 = vxpose.xlu0.b32.cont [14/16] 0.0, 128
        %1607 = vxpose.xlu0.b32.cont [15/16] 0.0, 128
        %1608 = vxpose.xlu0.b32.end [16/16] 0.0, 128
        %v1609 = vpop.trf.xlu0
        %v1610 = vpop.trf.xlu0
        %v1611 = vpop.trf.xlu0
        %v1612 = vpop.trf.xlu0
        %v1613 = vpop.trf.xlu0
        %v1614 = vpop.trf.xlu0
        %v1615 = vpop.trf.xlu0
        %v1616 = vpop.trf.xlu0
        %v1617 = vpop.trf.xlu0
        %v1618 = vpop.trf.xlu0
        %v1619 = vpop.trf.xlu0
        %v1620 = vpop.trf.xlu0
        %v1621 = vpop.trf.xlu0
        %v1622 = vpop.trf.xlu0
        %v1623 = vpop.trf.xlu0
        %v1624 = vpop.trf.xlu0
        %1625 = vxpose.xlu0.b32.start [1/16] %v990, 128
        %1626 = vxpose.xlu0.b32.cont [2/16] %v992, 128
        %1627 = vxpose.xlu0.b32.cont [3/16] 0.0, 128
        %1628 = vxpose.xlu0.b32.cont [4/16] 0.0, 128
        %1629 = vxpose.xlu0.b32.cont [5/16] 0.0, 128
        %1630 = vxpose.xlu0.b32.cont [6/16] 0.0, 128
        %1631 = vxpose.xlu0.b32.cont [7/16] 0.0, 128
        %1632 = vxpose.xlu0.b32.cont [8/16] 0.0, 128
        %1633 = vxpose.xlu0.b32.cont [9/16] 0.0, 128
        %1634 = vxpose.xlu0.b32.cont [10/16] 0.0, 128
        %1635 = vxpose.xlu0.b32.cont [11/16] 0.0, 128
        %1636 = vxpose.xlu0.b32.cont [12/16] 0.0, 128
        %1637 = vxpose.xlu0.b32.cont [13/16] 0.0, 128
        %1638 = vxpose.xlu0.b32.cont [14/16] 0.0, 128
        %1639 = vxpose.xlu0.b32.cont [15/16] 0.0, 128
        %1640 = vxpose.xlu0.b32.end [16/16] 0.0, 128
        %v1641 = vpop.trf.xlu0
        %v1642 = vpop.trf.xlu0
        %v1643 = vpop.trf.xlu0
        %v1644 = vpop.trf.xlu0
        %v1645 = vpop.trf.xlu0
        %v1646 = vpop.trf.xlu0
        %v1647 = vpop.trf.xlu0
        %v1648 = vpop.trf.xlu0
        %v1649 = vpop.trf.xlu0
        %v1650 = vpop.trf.xlu0
        %v1651 = vpop.trf.xlu0
        %v1652 = vpop.trf.xlu0
        %v1653 = vpop.trf.xlu0
        %v1654 = vpop.trf.xlu0
        %v1655 = vpop.trf.xlu0
        %v1656 = vpop.trf.xlu0
        %v1658 = vsel %vm1440, %v1545, 0
        %v1661 = vsel %vm1440, %v1521, 0
        %v1664 = vsel %vm1440, %v1522, 0
        %1666 = vmatprep.subr.mxu0 0.0
        %1667 = vmatpush1.xpose.msra.mxu0 0.0
        %1668 = vmatprep.subr.mxu0 0.0
        %1669 = vmatpush1.xpose.msra.mxu0 0.0
        %1670 = vmatprep.subr.mxu0 0.0
        %1671 = vmatpush1.xpose.msra.mxu0 0.0
        %1672 = vmatprep.subr.mxu0 0.0
        %1673 = vmatpush1.xpose.msra.mxu0 0.0
        %1674 = vmatprep.subr.mxu0 0.0
        %1675 = vmatpush1.xpose.msra.mxu0 0.0
        %1676 = vmatprep.subr.mxu0 0.0
        %1677 = vmatpush1.xpose.msra.mxu0 0.0
        %1678 = vmatprep.subr.mxu0 0.0
        %1679 = vmatpush1.xpose.msra.mxu0 0.0
        %1680 = vmatprep.subr.mxu0 0.0
        %1681 = vmatpush1.xpose.msra.mxu0 0.0
        %1682 = vmatprep.subr.mxu0 0.0
        %1683 = vmatpush1.xpose.msra.mxu0 0.0
        %1684 = vmatprep.subr.mxu0 0.0
        %1685 = vmatpush1.xpose.msra.mxu0 0.0
        %1686 = vmatprep.subr.mxu0 0.0
        %1687 = vmatpush1.xpose.msra.mxu0 0.0
        %1688 = vmatprep.subr.mxu0 0.0
        %1689 = vmatpush1.xpose.msra.mxu0 0.0
        %1690 = vmatprep.subr.mxu0 0.0
        %1691 = vmatpush1.xpose.msra.mxu0 0.0
        %1692 = vmatprep.subr.mxu0 0.0
        %1693 = vmatpush1.xpose.msra.mxu0 0.0
        %1694 = vmatprep.subr.mxu0 0.0
        %1695 = vmatpush1.xpose.msra.mxu0 %v1664
        %1696 = vmatprep.subr.mxu0 0.0
        %1697 = vmatpush1.xpose.msra.mxu0 %v1661
        %1698 = vmatprep.subr.mxu0 0.0
        %1699 = vmatpush2.xpose.msra.mxu0 0.0
        %1700 = vmatprep.subr.mxu0 0.0
        %1701 = vmatpush2.xpose.msra.mxu0 0.0
        %1702 = vmatprep.subr.mxu0 0.0
        %1703 = vmatpush2.xpose.msra.mxu0 0.0
        %1704 = vmatprep.subr.mxu0 0.0
        %1705 = vmatpush2.xpose.msra.mxu0 0.0
        %1706 = vmatprep.subr.mxu0 0.0
        %1707 = vmatpush2.xpose.msra.mxu0 0.0
        %1708 = vmatprep.subr.mxu0 0.0
        %1709 = vmatpush2.xpose.msra.mxu0 0.0
        %1710 = vmatprep.subr.mxu0 0.0
        %1711 = vmatpush2.xpose.msra.mxu0 0.0
        %1712 = vmatprep.subr.mxu0 0.0
        %1713 = vmatpush2.xpose.msra.mxu0 0.0
        %1714 = vmatprep.subr.mxu0 0.0
        %1715 = vmatpush2.xpose.msra.mxu0 0.0
        %1716 = vmatprep.subr.mxu0 0.0
        %1717 = vmatpush2.xpose.msra.mxu0 0.0
        %1718 = vmatprep.subr.mxu0 0.0
        %1719 = vmatpush2.xpose.msra.mxu0 0.0
        %1720 = vmatprep.subr.mxu0 0.0
        %1721 = vmatpush2.xpose.msra.mxu0 0.0
        %1722 = vmatprep.subr.mxu0 0.0
        %1723 = vmatpush2.xpose.msra.mxu0 0.0
        %1724 = vmatprep.subr.mxu0 0.0
        %1725 = vmatpush2.xpose.msra.mxu0 0.0
        %1726 = vmatprep.subr.mxu0 0.0
        %1727 = vmatpush2.xpose.msra.mxu0 0.0
        %1728 = vmatprep.subr.mxu0 0.0
        %1729 = vmatpush2.xpose.msra.mxu0 0.0
        %1730 = vmatprep.mubr.f32.mxu0 0.0
        %1731 = vmatmul.mubr.f32.gmra.mxu0 %v1658
        %v1732 = vpop.f32.mrf.mxu0
        %v1733 = vadd.f32 0.0, %v1732
        %v1734 = vpop.f32.mrf.mxu0
        %1735 = vdwg.mxu0
        %v1737 = vsel %vm1440, %v1577, 0
        %v1740 = vsel %vm1440, %v1523, 0
        %v1743 = vsel %vm1440, %v1524, 0
        %1745 = vmatprep.subr.mxu0 0.0
        %1746 = vmatpush1.xpose.msra.mxu0 0.0
        %1747 = vmatprep.subr.mxu0 0.0
        %1748 = vmatpush1.xpose.msra.mxu0 0.0
        %1749 = vmatprep.subr.mxu0 0.0
        %1750 = vmatpush1.xpose.msra.mxu0 0.0
        %1751 = vmatprep.subr.mxu0 0.0
        %1752 = vmatpush1.xpose.msra.mxu0 0.0
        %1753 = vmatprep.subr.mxu0 0.0
        %1754 = vmatpush1.xpose.msra.mxu0 0.0
        %1755 = vmatprep.subr.mxu0 0.0
        %1756 = vmatpush1.xpose.msra.mxu0 0.0
        %1757 = vmatprep.subr.mxu0 0.0
        %1758 = vmatpush1.xpose.msra.mxu0 0.0
        %1759 = vmatprep.subr.mxu0 0.0
        %1760 = vmatpush1.xpose.msra.mxu0 0.0
        %1761 = vmatprep.subr.mxu0 0.0
        %1762 = vmatpush1.xpose.msra.mxu0 0.0
        %1763 = vmatprep.subr.mxu0 0.0
        %1764 = vmatpush1.xpose.msra.mxu0 0.0
        %1765 = vmatprep.subr.mxu0 0.0
        %1766 = vmatpush1.xpose.msra.mxu0 0.0
        %1767 = vmatprep.subr.mxu0 0.0
        %1768 = vmatpush1.xpose.msra.mxu0 0.0
        %1769 = vmatprep.subr.mxu0 0.0
        %1770 = vmatpush1.xpose.msra.mxu0 0.0
        %1771 = vmatprep.subr.mxu0 0.0
        %1772 = vmatpush1.xpose.msra.mxu0 0.0
        %1773 = vmatprep.subr.mxu0 0.0
        %1774 = vmatpush1.xpose.msra.mxu0 %v1743
        %1775 = vmatprep.subr.mxu0 0.0
        %1776 = vmatpush1.xpose.msra.mxu0 %v1740
        %1777 = vmatprep.subr.mxu0 0.0
        %1778 = vmatpush2.xpose.msra.mxu0 0.0
        %1779 = vmatprep.subr.mxu0 0.0
        %1780 = vmatpush2.xpose.msra.mxu0 0.0
        %1781 = vmatprep.subr.mxu0 0.0
        %1782 = vmatpush2.xpose.msra.mxu0 0.0
        %1783 = vmatprep.subr.mxu0 0.0
        %1784 = vmatpush2.xpose.msra.mxu0 0.0
        %1785 = vmatprep.subr.mxu0 0.0
        %1786 = vmatpush2.xpose.msra.mxu0 0.0
        %1787 = vmatprep.subr.mxu0 0.0
        %1788 = vmatpush2.xpose.msra.mxu0 0.0
        %1789 = vmatprep.subr.mxu0 0.0
        %1790 = vmatpush2.xpose.msra.mxu0 0.0
        %1791 = vmatprep.subr.mxu0 0.0
        %1792 = vmatpush2.xpose.msra.mxu0 0.0
        %1793 = vmatprep.subr.mxu0 0.0
        %1794 = vmatpush2.xpose.msra.mxu0 0.0
        %1795 = vmatprep.subr.mxu0 0.0
        %1796 = vmatpush2.xpose.msra.mxu0 0.0
        %1797 = vmatprep.subr.mxu0 0.0
        %1798 = vmatpush2.xpose.msra.mxu0 0.0
        %1799 = vmatprep.subr.mxu0 0.0
        %1800 = vmatpush2.xpose.msra.mxu0 0.0
        %1801 = vmatprep.subr.mxu0 0.0
        %1802 = vmatpush2.xpose.msra.mxu0 0.0
        %1803 = vmatprep.subr.mxu0 0.0
        %1804 = vmatpush2.xpose.msra.mxu0 0.0
        %1805 = vmatprep.subr.mxu0 0.0
        %1806 = vmatpush2.xpose.msra.mxu0 0.0
        %1807 = vmatprep.subr.mxu0 0.0
        %1808 = vmatpush2.xpose.msra.mxu0 0.0
        %1809 = vmatprep.mubr.f32.mxu0 0.0
        %1810 = vmatmul.mubr.f32.gmra.mxu0 %v1737
        %v1811 = vpop.f32.mrf.mxu0
        %v1812 = vadd.f32 0.0, %v1811
        %v1813 = vpop.f32.mrf.mxu0
        %1814 = vdwg.mxu0
        %v1816 = vsel %vm1440, %v1609, 0
        %v1819 = vsel %vm1440, %v1525, 0
        %v1822 = vsel %vm1440, %v1526, 0
        %1824 = vmatprep.subr.mxu0 0.0
        %1825 = vmatpush1.xpose.msra.mxu0 0.0
        %1826 = vmatprep.subr.mxu0 0.0
        %1827 = vmatpush1.xpose.msra.mxu0 0.0
        %1828 = vmatprep.subr.mxu0 0.0
        %1829 = vmatpush1.xpose.msra.mxu0 0.0
        %1830 = vmatprep.subr.mxu0 0.0
        %1831 = vmatpush1.xpose.msra.mxu0 0.0
        %1832 = vmatprep.subr.mxu0 0.0
        %1833 = vmatpush1.xpose.msra.mxu0 0.0
        %1834 = vmatprep.subr.mxu0 0.0
        %1835 = vmatpush1.xpose.msra.mxu0 0.0
        %1836 = vmatprep.subr.mxu0 0.0
        %1837 = vmatpush1.xpose.msra.mxu0 0.0
        %1838 = vmatprep.subr.mxu0 0.0
        %1839 = vmatpush1.xpose.msra.mxu0 0.0
        %1840 = vmatprep.subr.mxu0 0.0
        %1841 = vmatpush1.xpose.msra.mxu0 0.0
        %1842 = vmatprep.subr.mxu0 0.0
        %1843 = vmatpush1.xpose.msra.mxu0 0.0
        %1844 = vmatprep.subr.mxu0 0.0
        %1845 = vmatpush1.xpose.msra.mxu0 0.0
        %1846 = vmatprep.subr.mxu0 0.0
        %1847 = vmatpush1.xpose.msra.mxu0 0.0
        %1848 = vmatprep.subr.mxu0 0.0
        %1849 = vmatpush1.xpose.msra.mxu0 0.0
        %1850 = vmatprep.subr.mxu0 0.0
        %1851 = vmatpush1.xpose.msra.mxu0 0.0
        %1852 = vmatprep.subr.mxu0 0.0
        %1853 = vmatpush1.xpose.msra.mxu0 %v1822
        %1854 = vmatprep.subr.mxu0 0.0
        %1855 = vmatpush1.xpose.msra.mxu0 %v1819
        %1856 = vmatprep.subr.mxu0 0.0
        %1857 = vmatpush2.xpose.msra.mxu0 0.0
        %1858 = vmatprep.subr.mxu0 0.0
        %1859 = vmatpush2.xpose.msra.mxu0 0.0
        %1860 = vmatprep.subr.mxu0 0.0
        %1861 = vmatpush2.xpose.msra.mxu0 0.0
        %1862 = vmatprep.subr.mxu0 0.0
        %1863 = vmatpush2.xpose.msra.mxu0 0.0
        %1864 = vmatprep.subr.mxu0 0.0
        %1865 = vmatpush2.xpose.msra.mxu0 0.0
        %1866 = vmatprep.subr.mxu0 0.0
        %1867 = vmatpush2.xpose.msra.mxu0 0.0
        %1868 = vmatprep.subr.mxu0 0.0
        %1869 = vmatpush2.xpose.msra.mxu0 0.0
        %1870 = vmatprep.subr.mxu0 0.0
        %1871 = vmatpush2.xpose.msra.mxu0 0.0
        %1872 = vmatprep.subr.mxu0 0.0
        %1873 = vmatpush2.xpose.msra.mxu0 0.0
        %1874 = vmatprep.subr.mxu0 0.0
        %1875 = vmatpush2.xpose.msra.mxu0 0.0
        %1876 = vmatprep.subr.mxu0 0.0
        %1877 = vmatpush2.xpose.msra.mxu0 0.0
        %1878 = vmatprep.subr.mxu0 0.0
        %1879 = vmatpush2.xpose.msra.mxu0 0.0
        %1880 = vmatprep.subr.mxu0 0.0
        %1881 = vmatpush2.xpose.msra.mxu0 0.0
        %1882 = vmatprep.subr.mxu0 0.0
        %1883 = vmatpush2.xpose.msra.mxu0 0.0
        %1884 = vmatprep.subr.mxu0 0.0
        %1885 = vmatpush2.xpose.msra.mxu0 0.0
        %1886 = vmatprep.subr.mxu0 0.0
        %1887 = vmatpush2.xpose.msra.mxu0 0.0
        %1888 = vmatprep.mubr.f32.mxu0 0.0
        %1889 = vmatmul.mubr.f32.gmra.mxu0 %v1816
        %v1890 = vpop.f32.mrf.mxu0
        %v1891 = vadd.f32 0.0, %v1890
        %v1892 = vpop.f32.mrf.mxu0
        %1893 = vdwg.mxu0
        %v1895 = vsel %vm1440, %v1641, 0
        %v1898 = vsel %vm1440, %v1527, 0
        %v1901 = vsel %vm1440, %v1528, 0
        %1903 = vmatprep.subr.mxu0 0.0
        %1904 = vmatpush1.xpose.msra.mxu0 0.0
        %1905 = vmatprep.subr.mxu0 0.0
        %1906 = vmatpush1.xpose.msra.mxu0 0.0
        %1907 = vmatprep.subr.mxu0 0.0
        %1908 = vmatpush1.xpose.msra.mxu0 0.0
        %1909 = vmatprep.subr.mxu0 0.0
        %1910 = vmatpush1.xpose.msra.mxu0 0.0
        %1911 = vmatprep.subr.mxu0 0.0
        %1912 = vmatpush1.xpose.msra.mxu0 0.0
        %1913 = vmatprep.subr.mxu0 0.0
        %1914 = vmatpush1.xpose.msra.mxu0 0.0
        %1915 = vmatprep.subr.mxu0 0.0
        %1916 = vmatpush1.xpose.msra.mxu0 0.0
        %1917 = vmatprep.subr.mxu0 0.0
        %1918 = vmatpush1.xpose.msra.mxu0 0.0
        %1919 = vmatprep.subr.mxu0 0.0
        %1920 = vmatpush1.xpose.msra.mxu0 0.0
        %1921 = vmatprep.subr.mxu0 0.0
        %1922 = vmatpush1.xpose.msra.mxu0 0.0
        %1923 = vmatprep.subr.mxu0 0.0
        %1924 = vmatpush1.xpose.msra.mxu0 0.0
        %1925 = vmatprep.subr.mxu0 0.0
        %1926 = vmatpush1.xpose.msra.mxu0 0.0
        %1927 = vmatprep.subr.mxu0 0.0
        %1928 = vmatpush1.xpose.msra.mxu0 0.0
        %1929 = vmatprep.subr.mxu0 0.0
        %1930 = vmatpush1.xpose.msra.mxu0 0.0
        %1931 = vmatprep.subr.mxu0 0.0
        %1932 = vmatpush1.xpose.msra.mxu0 %v1901
        %1933 = vmatprep.subr.mxu0 0.0
        %1934 = vmatpush1.xpose.msra.mxu0 %v1898
        %1935 = vmatprep.subr.mxu0 0.0
        %1936 = vmatpush2.xpose.msra.mxu0 0.0
        %1937 = vmatprep.subr.mxu0 0.0
        %1938 = vmatpush2.xpose.msra.mxu0 0.0
        %1939 = vmatprep.subr.mxu0 0.0
        %1940 = vmatpush2.xpose.msra.mxu0 0.0
        %1941 = vmatprep.subr.mxu0 0.0
        %1942 = vmatpush2.xpose.msra.mxu0 0.0
        %1943 = vmatprep.subr.mxu0 0.0
        %1944 = vmatpush2.xpose.msra.mxu0 0.0
        %1945 = vmatprep.subr.mxu0 0.0
        %1946 = vmatpush2.xpose.msra.mxu0 0.0
        %1947 = vmatprep.subr.mxu0 0.0
        %1948 = vmatpush2.xpose.msra.mxu0 0.0
        %1949 = vmatprep.subr.mxu0 0.0
        %1950 = vmatpush2.xpose.msra.mxu0 0.0
        %1951 = vmatprep.subr.mxu0 0.0
        %1952 = vmatpush2.xpose.msra.mxu0 0.0
        %1953 = vmatprep.subr.mxu0 0.0
        %1954 = vmatpush2.xpose.msra.mxu0 0.0
        %1955 = vmatprep.subr.mxu0 0.0
        %1956 = vmatpush2.xpose.msra.mxu0 0.0
        %1957 = vmatprep.subr.mxu0 0.0
        %1958 = vmatpush2.xpose.msra.mxu0 0.0
        %1959 = vmatprep.subr.mxu0 0.0
        %1960 = vmatpush2.xpose.msra.mxu0 0.0
        %1961 = vmatprep.subr.mxu0 0.0
        %1962 = vmatpush2.xpose.msra.mxu0 0.0
        %1963 = vmatprep.subr.mxu0 0.0
        %1964 = vmatpush2.xpose.msra.mxu0 0.0
        %1965 = vmatprep.subr.mxu0 0.0
        %1966 = vmatpush2.xpose.msra.mxu0 0.0
        %1967 = vmatprep.mubr.f32.mxu0 0.0
        %1968 = vmatmul.mubr.f32.gmra.mxu0 %v1895
        %v1969 = vpop.f32.mrf.mxu0
        %v1970 = vadd.f32 0.0, %v1969
        %v1971 = vpop.f32.mrf.mxu0
        %1972 = vdwg.mxu0
        %1973 = vxpose.xlu0.b32.start [1/16] %v1733, 128
        %1974 = vxpose.xlu0.b32.cont [2/16] 0.0, 128
        %1975 = vxpose.xlu0.b32.cont [3/16] 0.0, 128
        %1976 = vxpose.xlu0.b32.cont [4/16] 0.0, 128
        %1977 = vxpose.xlu0.b32.cont [5/16] 0.0, 128
        %1978 = vxpose.xlu0.b32.cont [6/16] 0.0, 128
        %1979 = vxpose.xlu0.b32.cont [7/16] 0.0, 128
        %1980 = vxpose.xlu0.b32.cont [8/16] 0.0, 128
        %1981 = vxpose.xlu0.b32.cont [9/16] 0.0, 128
        %1982 = vxpose.xlu0.b32.cont [10/16] 0.0, 128
        %1983 = vxpose.xlu0.b32.cont [11/16] 0.0, 128
        %1984 = vxpose.xlu0.b32.cont [12/16] 0.0, 128
        %1985 = vxpose.xlu0.b32.cont [13/16] 0.0, 128
        %1986 = vxpose.xlu0.b32.cont [14/16] 0.0, 128
        %1987 = vxpose.xlu0.b32.cont [15/16] 0.0, 128
        %1988 = vxpose.xlu0.b32.end [16/16] 0.0, 128
        %v1989 = vpop.trf.xlu0
        %v1990 = vpop.trf.xlu0
        %v1991 = vpop.trf.xlu0
        %v1992 = vpop.trf.xlu0
        %v1993 = vpop.trf.xlu0
        %v1994 = vpop.trf.xlu0
        %v1995 = vpop.trf.xlu0
        %v1996 = vpop.trf.xlu0
        %v1997 = vpop.trf.xlu0
        %v1998 = vpop.trf.xlu0
        %v1999 = vpop.trf.xlu0
        %v2000 = vpop.trf.xlu0
        %v2001 = vpop.trf.xlu0
        %v2002 = vpop.trf.xlu0
        %v2003 = vpop.trf.xlu0
        %v2004 = vpop.trf.xlu0
        %2005 = vxpose.xlu0.b32.start [1/16] %v1812, 128
        %2006 = vxpose.xlu0.b32.cont [2/16] 0.0, 128
        %2007 = vxpose.xlu0.b32.cont [3/16] 0.0, 128
        %2008 = vxpose.xlu0.b32.cont [4/16] 0.0, 128
        %2009 = vxpose.xlu0.b32.cont [5/16] 0.0, 128
        %2010 = vxpose.xlu0.b32.cont [6/16] 0.0, 128
        %2011 = vxpose.xlu0.b32.cont [7/16] 0.0, 128
        %2012 = vxpose.xlu0.b32.cont [8/16] 0.0, 128
        %2013 = vxpose.xlu0.b32.cont [9/16] 0.0, 128
        %2014 = vxpose.xlu0.b32.cont [10/16] 0.0, 128
        %2015 = vxpose.xlu0.b32.cont [11/16] 0.0, 128
        %2016 = vxpose.xlu0.b32.cont [12/16] 0.0, 128
        %2017 = vxpose.xlu0.b32.cont [13/16] 0.0, 128
        %2018 = vxpose.xlu0.b32.cont [14/16] 0.0, 128
        %2019 = vxpose.xlu0.b32.cont [15/16] 0.0, 128
        %2020 = vxpose.xlu0.b32.end [16/16] 0.0, 128
        %v2021 = vpop.trf.xlu0
        %v2022 = vpop.trf.xlu0
        %v2023 = vpop.trf.xlu0
        %v2024 = vpop.trf.xlu0
        %v2025 = vpop.trf.xlu0
        %v2026 = vpop.trf.xlu0
        %v2027 = vpop.trf.xlu0
        %v2028 = vpop.trf.xlu0
        %v2029 = vpop.trf.xlu0
        %v2030 = vpop.trf.xlu0
        %v2031 = vpop.trf.xlu0
        %v2032 = vpop.trf.xlu0
        %v2033 = vpop.trf.xlu0
        %v2034 = vpop.trf.xlu0
        %v2035 = vpop.trf.xlu0
        %v2036 = vpop.trf.xlu0
        %2037 = vxpose.xlu0.b32.start [1/16] %v1891, 128
        %2038 = vxpose.xlu0.b32.cont [2/16] 0.0, 128
        %2039 = vxpose.xlu0.b32.cont [3/16] 0.0, 128
        %2040 = vxpose.xlu0.b32.cont [4/16] 0.0, 128
        %2041 = vxpose.xlu0.b32.cont [5/16] 0.0, 128
        %2042 = vxpose.xlu0.b32.cont [6/16] 0.0, 128
        %2043 = vxpose.xlu0.b32.cont [7/16] 0.0, 128
        %2044 = vxpose.xlu0.b32.cont [8/16] 0.0, 128
        %2045 = vxpose.xlu0.b32.cont [9/16] 0.0, 128
        %2046 = vxpose.xlu0.b32.cont [10/16] 0.0, 128
        %2047 = vxpose.xlu0.b32.cont [11/16] 0.0, 128
        %2048 = vxpose.xlu0.b32.cont [12/16] 0.0, 128
        %2049 = vxpose.xlu0.b32.cont [13/16] 0.0, 128
        %2050 = vxpose.xlu0.b32.cont [14/16] 0.0, 128
        %2051 = vxpose.xlu0.b32.cont [15/16] 0.0, 128
        %2052 = vxpose.xlu0.b32.end [16/16] 0.0, 128
        %v2053 = vpop.trf.xlu0
        %v2054 = vpop.trf.xlu0
        %v2055 = vpop.trf.xlu0
        %v2056 = vpop.trf.xlu0
        %v2057 = vpop.trf.xlu0
        %v2058 = vpop.trf.xlu0
        %v2059 = vpop.trf.xlu0
        %v2060 = vpop.trf.xlu0
        %v2061 = vpop.trf.xlu0
        %v2062 = vpop.trf.xlu0
        %v2063 = vpop.trf.xlu0
        %v2064 = vpop.trf.xlu0
        %v2065 = vpop.trf.xlu0
        %v2066 = vpop.trf.xlu0
        %v2067 = vpop.trf.xlu0
        %v2068 = vpop.trf.xlu0
        %2069 = vxpose.xlu0.b32.start [1/16] %v1970, 128
        %2070 = vxpose.xlu0.b32.cont [2/16] 0.0, 128
        %2071 = vxpose.xlu0.b32.cont [3/16] 0.0, 128
        %2072 = vxpose.xlu0.b32.cont [4/16] 0.0, 128
        %2073 = vxpose.xlu0.b32.cont [5/16] 0.0, 128
        %2074 = vxpose.xlu0.b32.cont [6/16] 0.0, 128
        %2075 = vxpose.xlu0.b32.cont [7/16] 0.0, 128
        %2076 = vxpose.xlu0.b32.cont [8/16] 0.0, 128
        %2077 = vxpose.xlu0.b32.cont [9/16] 0.0, 128
        %2078 = vxpose.xlu0.b32.cont [10/16] 0.0, 128
        %2079 = vxpose.xlu0.b32.cont [11/16] 0.0, 128
        %2080 = vxpose.xlu0.b32.cont [12/16] 0.0, 128
        %2081 = vxpose.xlu0.b32.cont [13/16] 0.0, 128
        %2082 = vxpose.xlu0.b32.cont [14/16] 0.0, 128
        %2083 = vxpose.xlu0.b32.cont [15/16] 0.0, 128
        %2084 = vxpose.xlu0.b32.end [16/16] 0.0, 128
        %v2085 = vpop.trf.xlu0
        %v2086 = vpop.trf.xlu0
        %v2087 = vpop.trf.xlu0
        %v2088 = vpop.trf.xlu0
        %v2089 = vpop.trf.xlu0
        %v2090 = vpop.trf.xlu0
        %v2091 = vpop.trf.xlu0
        %v2092 = vpop.trf.xlu0
        %v2093 = vpop.trf.xlu0
        %v2094 = vpop.trf.xlu0
        %v2095 = vpop.trf.xlu0
        %v2096 = vpop.trf.xlu0
        %v2097 = vpop.trf.xlu0
        %v2098 = vpop.trf.xlu0
        %v2099 = vpop.trf.xlu0
        %v2100 = vpop.trf.xlu0
        %v2101 = vcombine.low %v1989, %v2053
        %v2102 = vcombine.high %v1989, %v2053
        %v2104 = vunpack.c.l.s4 1983009808
        %v2105 = vunpack.c.0.s8 %v2104
        %v2106 = vlaneseq
        %v2107 = vshrl.u32 %v2106, 7
        %v2108 = vsub.s32 %v2105, %v2107
        %v2109 = vrot.slane %v2101, %v2108
        %v2111 = vunpack.c.l.s4 1983009808
        %v2112 = vunpack.c.0.s8 %v2111
        %v2113 = vlaneseq
        %v2114 = vshrl.u32 %v2113, 7
        %v2115 = vsub.s32 %v2112, %v2114
        %v2116 = vrot.slane %v2102, %v2115
        %v2117 = vcombine.low %v2021, %v2085
        %v2118 = vcombine.high %v2021, %v2085
        %v2120 = vunpack.c.l.s4 1983009808
        %v2121 = vunpack.c.0.s8 %v2120
        %v2122 = vlaneseq
        %v2123 = vshrl.u32 %v2122, 7
        %v2124 = vsub.s32 %v2121, %v2123
        %v2125 = vrot.slane %v2117, %v2124
        %v2127 = vunpack.c.l.s4 1983009808
        %v2128 = vunpack.c.0.s8 %v2127
        %v2129 = vlaneseq
        %v2130 = vshrl.u32 %v2129, 7
        %v2131 = vsub.s32 %v2128, %v2130
        %v2132 = vrot.slane %v2118, %v2131
        %v2133 = vcombine.low %v2109, %v2125
        %v2134 = vcombine.high %v2109, %v2125
        %v2136 = vunpack.c.l.s4 1934713408
        %v2137 = vunpack.c.0.s8 %v2136
        %v2138 = vlaneseq
        %v2139 = vshrl.u32 %v2138, 7
        %v2140 = vsub.s32 %v2137, %v2139
        %v2141 = vrot.slane %v2133, %v2140
        %v2143 = vunpack.c.l.s4 1934713408
        %v2144 = vunpack.c.0.s8 %v2143
        %v2145 = vlaneseq
        %v2146 = vshrl.u32 %v2145, 7
        %v2147 = vsub.s32 %v2144, %v2146
        %v2148 = vrot.slane %v2134, %v2147
        %v2149 = vcombine.low %v2116, %v2132
        %v2150 = vcombine.high %v2116, %v2132
        %v2152 = vunpack.c.l.s4 1934713408
        %v2153 = vunpack.c.0.s8 %v2152
        %v2154 = vlaneseq
        %v2155 = vshrl.u32 %v2154, 7
        %v2156 = vsub.s32 %v2153, %v2155
        %v2157 = vrot.slane %v2149, %v2156
        %v2159 = vunpack.c.l.s4 1934713408
        %v2160 = vunpack.c.0.s8 %v2159
        %v2161 = vlaneseq
        %v2162 = vshrl.u32 %v2161, 7
        %v2163 = vsub.s32 %v2160, %v2162
        %v2164 = vrot.slane %v2150, %v2163
        %v2165 = vcombine.high %v2141, 0.0
        %v2166 = vcombine.high %v2148, 0.0
        %v2167 = vcombine.high %v2157, 0.0
        %v2168 = vcombine.high %v2164, 0.0
        %v2169 = vcombine.low %v1990, %v2054
        %v2170 = vcombine.high %v1990, %v2054
        %v2172 = vunpack.c.l.s4 1983009808
        %v2173 = vunpack.c.0.s8 %v2172
        %v2174 = vlaneseq
        %v2175 = vshrl.u32 %v2174, 7
        %v2176 = vsub.s32 %v2173, %v2175
        %v2177 = vrot.slane %v2169, %v2176
        %v2179 = vunpack.c.l.s4 1983009808
        %v2180 = vunpack.c.0.s8 %v2179
        %v2181 = vlaneseq
        %v2182 = vshrl.u32 %v2181, 7
        %v2183 = vsub.s32 %v2180, %v2182
        %v2184 = vrot.slane %v2170, %v2183
        %v2185 = vcombine.low %v2022, %v2086
        %v2186 = vcombine.high %v2022, %v2086
        %v2188 = vunpack.c.l.s4 1983009808
        %v2189 = vunpack.c.0.s8 %v2188
        %v2190 = vlaneseq
        %v2191 = vshrl.u32 %v2190, 7
        %v2192 = vsub.s32 %v2189, %v2191
        %v2193 = vrot.slane %v2185, %v2192
        %v2195 = vunpack.c.l.s4 1983009808
        %v2196 = vunpack.c.0.s8 %v2195
        %v2197 = vlaneseq
        %v2198 = vshrl.u32 %v2197, 7
        %v2199 = vsub.s32 %v2196, %v2198
        %v2200 = vrot.slane %v2186, %v2199
        %v2201 = vcombine.low %v2177, %v2193
        %v2202 = vcombine.high %v2177, %v2193
        %v2204 = vunpack.c.l.s4 1934713408
        %v2205 = vunpack.c.0.s8 %v2204
        %v2206 = vlaneseq
        %v2207 = vshrl.u32 %v2206, 7
        %v2208 = vsub.s32 %v2205, %v2207
        %v2209 = vrot.slane %v2201, %v2208
        %v2211 = vunpack.c.l.s4 1934713408
        %v2212 = vunpack.c.0.s8 %v2211
        %v2213 = vlaneseq
        %v2214 = vshrl.u32 %v2213, 7
        %v2215 = vsub.s32 %v2212, %v2214
        %v2216 = vrot.slane %v2202, %v2215
        %v2217 = vcombine.low %v2184, %v2200
        %v2218 = vcombine.high %v2184, %v2200
        %v2220 = vunpack.c.l.s4 1934713408
        %v2221 = vunpack.c.0.s8 %v2220
        %v2222 = vlaneseq
        %v2223 = vshrl.u32 %v2222, 7
        %v2224 = vsub.s32 %v2221, %v2223
        %v2225 = vrot.slane %v2217, %v2224
        %v2227 = vunpack.c.l.s4 1934713408
        %v2228 = vunpack.c.0.s8 %v2227
        %v2229 = vlaneseq
        %v2230 = vshrl.u32 %v2229, 7
        %v2231 = vsub.s32 %v2228, %v2230
        %v2232 = vrot.slane %v2218, %v2231
        %v2233 = vcombine.high %v2209, 0.0
        %v2234 = vcombine.high %v2216, 0.0
        %v2235 = vcombine.high %v2225, 0.0
        %v2236 = vcombine.high %v2232, 0.0
        %v2237 = vcombine.low %v2141, %v2148
        %v2239 = vunpack.c.l.s4 1983009808
        %v2240 = vunpack.c.0.s8 %v2239
        %v2241 = vlaneseq
        %v2242 = vshrl.u32 %v2241, 7
        %v2243 = vsub.s32 %v2240, %v2242
        %v2244 = vrot.slane %v2237, %v2243
        %v2245 = vcombine.low %v2165, %v2166
        %v2247 = vunpack.c.l.s4 1983009808
        %v2248 = vunpack.c.0.s8 %v2247
        %v2249 = vlaneseq
        %v2250 = vshrl.u32 %v2249, 7
        %v2251 = vsub.s32 %v2248, %v2250
        %v2252 = vrot.slane %v2245, %v2251
        %v2253 = vcombine.low %v2157, %v2164
        %v2255 = vunpack.c.l.s4 1983009808
        %v2256 = vunpack.c.0.s8 %v2255
        %v2257 = vlaneseq
        %v2258 = vshrl.u32 %v2257, 7
        %v2259 = vsub.s32 %v2256, %v2258
        %v2260 = vrot.slane %v2253, %v2259
        %v2261 = vcombine.low %v2167, %v2168
        %v2263 = vunpack.c.l.s4 1983009808
        %v2264 = vunpack.c.0.s8 %v2263
        %v2265 = vlaneseq
        %v2266 = vshrl.u32 %v2265, 7
        %v2267 = vsub.s32 %v2264, %v2266
        %v2268 = vrot.slane %v2261, %v2267
        %v2269 = vcombine.low %v2244, %v2252
        %v2270 = vcombine.high %v2244, %v2252
        %v2272 = vunpack.c.l.s4 1934713408
        %v2273 = vunpack.c.0.s8 %v2272
        %v2274 = vlaneseq
        %v2275 = vshrl.u32 %v2274, 7
        %v2276 = vsub.s32 %v2273, %v2275
        %v2277 = vrot.slane %v2269, %v2276
        %v2279 = vunpack.c.l.s4 1934713408
        %v2280 = vunpack.c.0.s8 %v2279
        %v2281 = vlaneseq
        %v2282 = vshrl.u32 %v2281, 7
        %v2283 = vsub.s32 %v2280, %v2282
        %v2284 = vrot.slane %v2270, %v2283
        %v2285 = vcombine.low %v2260, %v2268
        %v2286 = vcombine.high %v2260, %v2268
        %v2288 = vunpack.c.l.s4 1934713408
        %v2289 = vunpack.c.0.s8 %v2288
        %v2290 = vlaneseq
        %v2291 = vshrl.u32 %v2290, 7
        %v2292 = vsub.s32 %v2289, %v2291
        %v2293 = vrot.slane %v2285, %v2292
        %v2295 = vunpack.c.l.s4 1934713408
        %v2296 = vunpack.c.0.s8 %v2295
        %v2297 = vlaneseq
        %v2298 = vshrl.u32 %v2297, 7
        %v2299 = vsub.s32 %v2296, %v2298
        %v2300 = vrot.slane %v2286, %v2299
        %v2301 = vcombine.low %v2277, %v2293
        %v2302 = vcombine.high %v2277, %v2293
        %v2303 = vcombine.low %v2284, %v2300
        %v2304 = vcombine.high %v2284, %v2300
        %v2305 = vcombine.low %v2209, %v2216
        %v2307 = vunpack.c.l.s4 1983009808
        %v2308 = vunpack.c.0.s8 %v2307
        %v2309 = vlaneseq
        %v2310 = vshrl.u32 %v2309, 7
        %v2311 = vsub.s32 %v2308, %v2310
        %v2312 = vrot.slane %v2305, %v2311
        %v2313 = vcombine.low %v2233, %v2234
        %v2315 = vunpack.c.l.s4 1983009808
        %v2316 = vunpack.c.0.s8 %v2315
        %v2317 = vlaneseq
        %v2318 = vshrl.u32 %v2317, 7
        %v2319 = vsub.s32 %v2316, %v2318
        %v2320 = vrot.slane %v2313, %v2319
        %v2321 = vcombine.low %v2225, %v2232
        %v2323 = vunpack.c.l.s4 1983009808
        %v2324 = vunpack.c.0.s8 %v2323
        %v2325 = vlaneseq
        %v2326 = vshrl.u32 %v2325, 7
        %v2327 = vsub.s32 %v2324, %v2326
        %v2328 = vrot.slane %v2321, %v2327
        %v2329 = vcombine.low %v2235, %v2236
        %v2331 = vunpack.c.l.s4 1983009808
        %v2332 = vunpack.c.0.s8 %v2331
        %v2333 = vlaneseq
        %v2334 = vshrl.u32 %v2333, 7
        %v2335 = vsub.s32 %v2332, %v2334
        %v2336 = vrot.slane %v2329, %v2335
        %v2337 = vcombine.low %v2312, %v2320
        %v2338 = vcombine.high %v2312, %v2320
        %v2340 = vunpack.c.l.s4 1934713408
        %v2341 = vunpack.c.0.s8 %v2340
        %v2342 = vlaneseq
        %v2343 = vshrl.u32 %v2342, 7
        %v2344 = vsub.s32 %v2341, %v2343
        %v2345 = vrot.slane %v2337, %v2344
        %v2347 = vunpack.c.l.s4 1934713408
        %v2348 = vunpack.c.0.s8 %v2347
        %v2349 = vlaneseq
        %v2350 = vshrl.u32 %v2349, 7
        %v2351 = vsub.s32 %v2348, %v2350
        %v2352 = vrot.slane %v2338, %v2351
        %v2353 = vcombine.low %v2328, %v2336
        %v2354 = vcombine.high %v2328, %v2336
        %v2356 = vunpack.c.l.s4 1934713408
        %v2357 = vunpack.c.0.s8 %v2356
        %v2358 = vlaneseq
        %v2359 = vshrl.u32 %v2358, 7
        %v2360 = vsub.s32 %v2357, %v2359
        %v2361 = vrot.slane %v2353, %v2360
        %v2363 = vunpack.c.l.s4 1934713408
        %v2364 = vunpack.c.0.s8 %v2363
        %v2365 = vlaneseq
        %v2366 = vshrl.u32 %v2365, 7
        %v2367 = vsub.s32 %v2364, %v2366
        %v2368 = vrot.slane %v2354, %v2367
        %v2369 = vcombine.low %v2345, %v2361
        %v2370 = vcombine.high %v2345, %v2361
        %v2371 = vcombine.low %v2352, %v2368
        %v2372 = vcombine.high %v2352, %v2368
        %2375 = vrot.lane.b32.xlu0 %v2302, 8
        %v2376 = vpop.permute.xlu0 %2375
        %2377 = vrot.lane.b32.xlu0 %v2370, 8
        %v2378 = vpop.permute.xlu0 %2377
        %2383 = vrot.lane.b32.xlu0 %v2303, 16
        %v2384 = vpop.permute.xlu0 %2383
        %2385 = vrot.lane.b32.xlu0 %v2371, 16
        %v2386 = vpop.permute.xlu0 %2385
        %2391 = vrot.lane.b32.xlu0 %v2304, 24
        %v2392 = vpop.permute.xlu0 %2391
        %2393 = vrot.lane.b32.xlu0 %v2372, 24
        %v2394 = vpop.permute.xlu0 %2393
        %v2397 = vsel %vm1123, %v2301, %v2376
        %v2398 = vsel %vm1123, %v2369, %v2378
        %v2399 = vsel %vm1440, %v2397, %v2384
        %v2400 = vsel %vm1440, %v2398, %v2386
        %vm2401 = vcmask 195584
        %v2402 = vsel %vm2401, %v2399, %v2392
        %v2403 = vsel %vm2401, %v2400, %v2394
        %v2405 = vlaneseq
        %v2406 = vshrl.u32 %v2405, 7
        %v2407 = vsub.s32 0, %v2406
        %v2408 = vrot.slane %v920, %v2407
        %v2411 = vsel %vm632, %v2402, 0
        %v2414 = vsel %vm632, %v2403, 0
        %2416 = vmatprep.subr.mxu0 0.0
        %2417 = vmatpush1.msra.mxu0 0.0
        %2418 = vmatprep.subr.mxu0 0.0
        %2419 = vmatpush1.msra.mxu0 0.0
        %2420 = vmatprep.subr.mxu0 0.0
        %2421 = vmatpush1.msra.mxu0 0.0
        %2422 = vmatprep.subr.mxu0 0.0
        %2423 = vmatpush1.msra.mxu0 0.0
        %2424 = vmatprep.subr.mxu0 0.0
        %2425 = vmatpush1.msra.mxu0 0.0
        %2426 = vmatprep.subr.mxu0 0.0
        %2427 = vmatpush1.msra.mxu0 0.0
        %2428 = vmatprep.subr.mxu0 0.0
        %2429 = vmatpush1.msra.mxu0 0.0
        %2430 = vmatprep.subr.mxu0 0.0
        %2431 = vmatpush1.msra.mxu0 0.0
        %2432 = vmatprep.subr.mxu0 0.0
        %2433 = vmatpush1.msra.mxu0 0.0
        %2434 = vmatprep.subr.mxu0 0.0
        %2435 = vmatpush1.msra.mxu0 0.0
        %2436 = vmatprep.subr.mxu0 0.0
        %2437 = vmatpush1.msra.mxu0 0.0
        %2438 = vmatprep.subr.mxu0 0.0
        %2439 = vmatpush1.msra.mxu0 0.0
        %2440 = vmatprep.subr.mxu0 0.0
        %2441 = vmatpush1.msra.mxu0 %v919
        %2442 = vmatprep.subr.mxu0 0.0
        %2443 = vmatpush1.msra.mxu0 %v918
        %2444 = vmatprep.subr.mxu0 0.0
        %2445 = vmatpush1.msra.mxu0 %v917
        %2446 = vmatprep.subr.mxu0 0.0
        %2447 = vmatpush1.msra.mxu0 %v916
        %2448 = vmatprep.subr.mxu0 0.0
        %2449 = vmatpush2.msra.mxu0 0.0
        %2450 = vmatprep.subr.mxu0 0.0
        %2451 = vmatpush2.msra.mxu0 0.0
        %2452 = vmatprep.subr.mxu0 0.0
        %2453 = vmatpush2.msra.mxu0 0.0
        %2454 = vmatprep.subr.mxu0 0.0
        %2455 = vmatpush2.msra.mxu0 0.0
        %2456 = vmatprep.subr.mxu0 0.0
        %2457 = vmatpush2.msra.mxu0 0.0
        %2458 = vmatprep.subr.mxu0 0.0
        %2459 = vmatpush2.msra.mxu0 0.0
        %2460 = vmatprep.subr.mxu0 0.0
        %2461 = vmatpush2.msra.mxu0 0.0
        %2462 = vmatprep.subr.mxu0 0.0
        %2463 = vmatpush2.msra.mxu0 0.0
        %2464 = vmatprep.subr.mxu0 0.0
        %2465 = vmatpush2.msra.mxu0 0.0
        %2466 = vmatprep.subr.mxu0 0.0
        %2467 = vmatpush2.msra.mxu0 0.0
        %2468 = vmatprep.subr.mxu0 0.0
        %2469 = vmatpush2.msra.mxu0 0.0
        %2470 = vmatprep.subr.mxu0 0.0
        %2471 = vmatpush2.msra.mxu0 0.0
        %2472 = vmatprep.subr.mxu0 0.0
        %2473 = vmatpush2.msra.mxu0 0.0
        %2474 = vmatprep.subr.mxu0 0.0
        %2475 = vmatpush2.msra.mxu0 0.0
        %2476 = vmatprep.subr.mxu0 0.0
        %2477 = vmatpush2.msra.mxu0 0.0
        %2478 = vmatprep.subr.mxu0 0.0
        %2479 = vmatpush2.msra.mxu0 0.0
        %2480 = vmatprep.mubr.f32.mxu0 0.0
        %2481 = vmatmul.mubr.f32.gmra.mxu0 %v2411
        %v2482 = vpop.f32.mrf.mxu0
        %v2483 = vadd.f32 %v2408, %v2482
        %v2484 = vpop.f32.mrf.mxu0
        %2485 = vmatprep.mubr.f32.mxu0 0.0
        %2486 = vmatmul.mubr.f32.gmra.mxu0 %v2414
        %v2487 = vpop.f32.mrf.mxu0
        %v2488 = vadd.f32 %v2408, %v2487
        %v2489 = vpop.f32.mrf.mxu0
        %2490 = vdwg.mxu0
        %v2491 = vadd.f32 %v2483, %v624
        %v2492 = vadd.f32 %v2488, %v625
        %v2493 = vsel %vm632, %v2491, 0.0
        %2494 = vadd.xlane.f32.xlu0 %v2493
        %v2495 = vpop.xlane.xlu0 %2494
        %v2496 = vsel %vm632, %v2492, 0.0
        %2497 = vadd.xlane.f32.xlu0 %v2496
        %v2498 = vpop.xlane.xlu0 %2497
        %v2499 = vrcp.pop 32.0
        %v2500 = vmul.f32 %v2495, %v2499
        %v2501 = vmul.f32 %v2498, %v2499
        %v2502 = vsub.f32 %v2491, %v2500
        %v2503 = vsub.f32 %v2492, %v2501
        %v2504 = vmul.f32 %v2502, %v2502
        %v2505 = vmul.f32 %v2503, %v2503
        %v2506 = vsel %vm632, %v2504, 0.0
        %2507 = vadd.xlane.f32.xlu0 %v2506
        %v2508 = vpop.xlane.xlu0 %2507
        %v2509 = vsel %vm632, %v2505, 0.0
        %2510 = vadd.xlane.f32.xlu0 %v2509
        %v2511 = vpop.xlane.xlu0 %2510
        %v2512 = vmul.f32 %v2508, %v2499
        %v2513 = vmul.f32 %v2511, %v2499
        %v2514 = vadd.f32 %v2512, 1e-05
        %v2515 = vadd.f32 %v2513, 1e-05
        %v2516 = vrsqrt.pop %v2514
        %v2517 = vrsqrt.pop %v2515
        %v2518 = vmul.f32 %v2502, %v2516
        %v2519 = vmul.f32 %v2503, %v2517
        %v2521 = vlaneseq
        %v2522 = vshrl.u32 %v2521, 7
        %v2523 = vsub.s32 0, %v2522
        %v2524 = vrot.slane %v921, %v2523
        %v2526 = vmul.f32 %v2518, %v2524
        %v2527 = vmul.f32 %v2519, %v2524
        %v2529 = vlaneseq
        %v2530 = vshrl.u32 %v2529, 7
        %v2531 = vsub.s32 0, %v2530
        %v2532 = vrot.slane %v922, %v2531
        %v2534 = vadd.f32 %v2526, %v2532
        %v2535 = vadd.f32 %v2527, %v2532
        %v2537 = vlaneseq
        %v2538 = vshrl.u32 %v2537, 7
        %v2539 = vsub.s32 0, %v2538
        %v2540 = vrot.slane %v927, %v2539
        %v2543 = vsel %vm632, %v2534, 0
        %v2546 = vsel %vm632, %v2535, 0
        %2548 = vmatprep.subr.mxu0 0.0
        %2549 = vmatpush1.msra.mxu0 0.0
        %2550 = vmatprep.subr.mxu0 0.0
        %2551 = vmatpush1.msra.mxu0 0.0
        %2552 = vmatprep.subr.mxu0 0.0
        %2553 = vmatpush1.msra.mxu0 0.0
        %2554 = vmatprep.subr.mxu0 0.0
        %2555 = vmatpush1.msra.mxu0 0.0
        %2556 = vmatprep.subr.mxu0 0.0
        %2557 = vmatpush1.msra.mxu0 0.0
        %2558 = vmatprep.subr.mxu0 0.0
        %2559 = vmatpush1.msra.mxu0 0.0
        %2560 = vmatprep.subr.mxu0 0.0
        %2561 = vmatpush1.msra.mxu0 0.0
        %2562 = vmatprep.subr.mxu0 0.0
        %2563 = vmatpush1.msra.mxu0 0.0
        %2564 = vmatprep.subr.mxu0 0.0
        %2565 = vmatpush1.msra.mxu0 0.0
        %2566 = vmatprep.subr.mxu0 0.0
        %2567 = vmatpush1.msra.mxu0 0.0
        %2568 = vmatprep.subr.mxu0 0.0
        %2569 = vmatpush1.msra.mxu0 0.0
        %2570 = vmatprep.subr.mxu0 0.0
        %2571 = vmatpush1.msra.mxu0 0.0
        %2572 = vmatprep.subr.mxu0 0.0
        %2573 = vmatpush1.msra.mxu0 %v926
        %2574 = vmatprep.subr.mxu0 0.0
        %2575 = vmatpush1.msra.mxu0 %v925
        %2576 = vmatprep.subr.mxu0 0.0
        %2577 = vmatpush1.msra.mxu0 %v924
        %2578 = vmatprep.subr.mxu0 0.0
        %2579 = vmatpush1.msra.mxu0 %v923
        %2580 = vmatprep.subr.mxu0 0.0
        %2581 = vmatpush2.msra.mxu0 0.0
        %2582 = vmatprep.subr.mxu0 0.0
        %2583 = vmatpush2.msra.mxu0 0.0
        %2584 = vmatprep.subr.mxu0 0.0
        %2585 = vmatpush2.msra.mxu0 0.0
        %2586 = vmatprep.subr.mxu0 0.0
        %2587 = vmatpush2.msra.mxu0 0.0
        %2588 = vmatprep.subr.mxu0 0.0
        %2589 = vmatpush2.msra.mxu0 0.0
        %2590 = vmatprep.subr.mxu0 0.0
        %2591 = vmatpush2.msra.mxu0 0.0
        %2592 = vmatprep.subr.mxu0 0.0
        %2593 = vmatpush2.msra.mxu0 0.0
        %2594 = vmatprep.subr.mxu0 0.0
        %2595 = vmatpush2.msra.mxu0 0.0
        %2596 = vmatprep.subr.mxu0 0.0
        %2597 = vmatpush2.msra.mxu0 0.0
        %2598 = vmatprep.subr.mxu0 0.0
        %2599 = vmatpush2.msra.mxu0 0.0
        %2600 = vmatprep.subr.mxu0 0.0
        %2601 = vmatpush2.msra.mxu0 0.0
        %2602 = vmatprep.subr.mxu0 0.0
        %2603 = vmatpush2.msra.mxu0 0.0
        %2604 = vmatprep.subr.mxu0 0.0
        %2605 = vmatpush2.msra.mxu0 0.0
        %2606 = vmatprep.subr.mxu0 0.0
        %2607 = vmatpush2.msra.mxu0 0.0
        %2608 = vmatprep.subr.mxu0 0.0
        %2609 = vmatpush2.msra.mxu0 0.0
        %2610 = vmatprep.subr.mxu0 0.0
        %2611 = vmatpush2.msra.mxu0 0.0
        %2612 = vmatprep.mubr.f32.mxu0 0.0
        %2613 = vmatmul.mubr.f32.gmra.mxu0 %v2543
        %v2614 = vpop.f32.mrf.mxu0
        %v2615 = vadd.f32 %v2540, %v2614
        %v2616 = vpop.f32.mrf.mxu0
        %2617 = vmatprep.mubr.f32.mxu0 0.0
        %2618 = vmatmul.mubr.f32.gmra.mxu0 %v2546
        %v2619 = vpop.f32.mrf.mxu0
        %v2620 = vadd.f32 %v2540, %v2619
        %v2621 = vpop.f32.mrf.mxu0
        %2622 = vdwg.mxu0
        %v2623 = vmax.f32 %v2615, 0.0
        %v2624 = vmax.f32 %v2620, 0.0
        %v2626 = vlaneseq
        %v2627 = vshrl.u32 %v2626, 7
        %v2628 = vsub.s32 0, %v2627
        %v2629 = vrot.slane %v936, %v2628
        %vm2631 = vcmask 523264
        %v2633 = vsel %vm2631, %v2623, 0
        %v2636 = vsel %vm2631, %v2624, 0
        %2638 = vmatprep.subr.mxu0 0.0
        %2639 = vmatpush1.msra.mxu0 0.0
        %2640 = vmatprep.subr.mxu0 0.0
        %2641 = vmatpush1.msra.mxu0 0.0
        %2642 = vmatprep.subr.mxu0 0.0
        %2643 = vmatpush1.msra.mxu0 0.0
        %2644 = vmatprep.subr.mxu0 0.0
        %2645 = vmatpush1.msra.mxu0 0.0
        %2646 = vmatprep.subr.mxu0 0.0
        %2647 = vmatpush1.msra.mxu0 0.0
        %2648 = vmatprep.subr.mxu0 0.0
        %2649 = vmatpush1.msra.mxu0 0.0
        %2650 = vmatprep.subr.mxu0 0.0
        %2651 = vmatpush1.msra.mxu0 0.0
        %2652 = vmatprep.subr.mxu0 0.0
        %2653 = vmatpush1.msra.mxu0 0.0
        %2654 = vmatprep.subr.mxu0 0.0
        %2655 = vmatpush1.msra.mxu0 %v935
        %2656 = vmatprep.subr.mxu0 0.0
        %2657 = vmatpush1.msra.mxu0 %v934
        %2658 = vmatprep.subr.mxu0 0.0
        %2659 = vmatpush1.msra.mxu0 %v933
        %2660 = vmatprep.subr.mxu0 0.0
        %2661 = vmatpush1.msra.mxu0 %v932
        %2662 = vmatprep.subr.mxu0 0.0
        %2663 = vmatpush1.msra.mxu0 %v931
        %2664 = vmatprep.subr.mxu0 0.0
        %2665 = vmatpush1.msra.mxu0 %v930
        %2666 = vmatprep.subr.mxu0 0.0
        %2667 = vmatpush1.msra.mxu0 %v929
        %2668 = vmatprep.subr.mxu0 0.0
        %2669 = vmatpush1.msra.mxu0 %v928
        %2670 = vmatprep.subr.mxu0 0.0
        %2671 = vmatpush2.msra.mxu0 0.0
        %2672 = vmatprep.subr.mxu0 0.0
        %2673 = vmatpush2.msra.mxu0 0.0
        %2674 = vmatprep.subr.mxu0 0.0
        %2675 = vmatpush2.msra.mxu0 0.0
        %2676 = vmatprep.subr.mxu0 0.0
        %2677 = vmatpush2.msra.mxu0 0.0
        %2678 = vmatprep.subr.mxu0 0.0
        %2679 = vmatpush2.msra.mxu0 0.0
        %2680 = vmatprep.subr.mxu0 0.0
        %2681 = vmatpush2.msra.mxu0 0.0
        %2682 = vmatprep.subr.mxu0 0.0
        %2683 = vmatpush2.msra.mxu0 0.0
        %2684 = vmatprep.subr.mxu0 0.0
        %2685 = vmatpush2.msra.mxu0 0.0
        %2686 = vmatprep.subr.mxu0 0.0
        %2687 = vmatpush2.msra.mxu0 0.0
        %2688 = vmatprep.subr.mxu0 0.0
        %2689 = vmatpush2.msra.mxu0 0.0
        %2690 = vmatprep.subr.mxu0 0.0
        %2691 = vmatpush2.msra.mxu0 0.0
        %2692 = vmatprep.subr.mxu0 0.0
        %2693 = vmatpush2.msra.mxu0 0.0
        %2694 = vmatprep.subr.mxu0 0.0
        %2695 = vmatpush2.msra.mxu0 0.0
        %2696 = vmatprep.subr.mxu0 0.0
        %2697 = vmatpush2.msra.mxu0 0.0
        %2698 = vmatprep.subr.mxu0 0.0
        %2699 = vmatpush2.msra.mxu0 0.0
        %2700 = vmatprep.subr.mxu0 0.0
        %2701 = vmatpush2.msra.mxu0 0.0
        %2702 = vmatprep.mubr.f32.mxu0 0.0
        %2703 = vmatmul.mubr.f32.gmra.mxu0 %v2633
        %v2704 = vpop.f32.mrf.mxu0
        %v2705 = vadd.f32 %v2629, %v2704
        %v2706 = vpop.f32.mrf.mxu0
        %2707 = vmatprep.mubr.f32.mxu0 0.0
        %2708 = vmatmul.mubr.f32.gmra.mxu0 %v2636
        %v2709 = vpop.f32.mrf.mxu0
        %v2710 = vadd.f32 %v2629, %v2709
        %v2711 = vpop.f32.mrf.mxu0
        %2712 = vdwg.mxu0
        %v2713 = vadd.f32 %v2705, %v2534
        %v2714 = vadd.f32 %v2710, %v2535
        %v2715 = vsel %vm632, %v2713, 0.0
        %2716 = vadd.xlane.f32.xlu0 %v2715
        %v2717 = vpop.xlane.xlu0 %2716
        %v2718 = vsel %vm632, %v2714, 0.0
        %2719 = vadd.xlane.f32.xlu0 %v2718
        %v2720 = vpop.xlane.xlu0 %2719
        %v2721 = vmul.f32 %v2717, %v2499
        %v2722 = vmul.f32 %v2720, %v2499
        %v2723 = vsub.f32 %v2713, %v2721
        %v2724 = vsub.f32 %v2714, %v2722
        %v2725 = vmul.f32 %v2723, %v2723
        %v2726 = vmul.f32 %v2724, %v2724
        %v2727 = vsel %vm632, %v2725, 0.0
        %2728 = vadd.xlane.f32.xlu0 %v2727
        %v2729 = vpop.xlane.xlu0 %2728
        %v2730 = vsel %vm632, %v2726, 0.0
        %2731 = vadd.xlane.f32.xlu0 %v2730
        %v2732 = vpop.xlane.xlu0 %2731
        %v2733 = vmul.f32 %v2729, %v2499
        %v2734 = vmul.f32 %v2732, %v2499
        %v2735 = vadd.f32 %v2733, 1e-05
        %v2736 = vadd.f32 %v2734, 1e-05
        %v2737 = vrsqrt.pop %v2735
        %v2738 = vrsqrt.pop %v2736
        %v2739 = vmul.f32 %v2723, %v2737
        %v2740 = vmul.f32 %v2724, %v2738
        %v2742 = vlaneseq
        %v2743 = vshrl.u32 %v2742, 7
        %v2744 = vsub.s32 0, %v2743
        %v2745 = vrot.slane %v937, %v2744
        %v2747 = vmul.f32 %v2739, %v2745
        %v2748 = vmul.f32 %v2740, %v2745
        %v2750 = vlaneseq
        %v2751 = vshrl.u32 %v2750, 7
        %v2752 = vsub.s32 0, %v2751
        %v2753 = vrot.slane %v938, %v2752
        %v2755 = vadd.f32 %v2747, %v2753
        %v2756 = vadd.f32 %v2748, %v2753
        %2757 = vst.msk [vmem:[%s603] sm:$0xff] %vm632, %v2755
        %2758 = vst.msk [vmem:[%s603 + $0x8] sm:$0xff] %vm632, %v2756
        %s2759 = sand.u32 %s392, 1
        %s2760 = scalar_lea.sflag [#allocation4], %s2759
        %s2761 = sand.u32 %s392, 1
        %s2762 = smul.addr %s2761, 16
        %s2763 = scalar_lea.vmem [#allocation10], %s2762
        // Predicated region
        $region101: #{tpu_custom_call.1} parent=83 // pred_check
          %p2764 = pneg %p402
        $region102: #{tpu_custom_call.1} parent=83 // pred_check_branch
          %2766 = sbr.rel (%p2764) target = $region104
        $region103: #{tpu_custom_call.1} parent=83 // pred_region
          %s2768 = ssub.s32 256, 256
          %2769 = vsyncadd %s2760, %s2768
          %s2770 = smul.addr %s33, 2
          %s2771 = smul.addr %s2770, 128
          %s2772 = scalar_lea.hbm %s16, %s2771
          %s2773 = sshll.u32 %s2763, 4
          %s2774 = int_to_ptr.vmem [resolvable:$true] %s2773
          %2779 = dma.vmem_to_hbm [thread:$0]  %s2774, 256, %s2772, %s2760, 128, 128, 8
        $region104: #{tpu_custom_call.1} parent=83 // pred_fallthru
          _
      $region84: #{tpu_custom_call.1} parent=5 // pred_fallthru
        _
      %p2780 = scmp.le.s32.totalorder 2, %s28
      // Predicated region
      $region105: #{tpu_custom_call.1} parent=5 // pred_check
        %p2781 = pneg %p2780
      $region106: #{tpu_custom_call.1} parent=5 // pred_check_branch
        %2783 = sbr.rel (%p2781) target = $region108
      $region107: #{tpu_custom_call.1} parent=5 // pred_region
        %s2784 = ssub.s32 %s28, 2
        // Predicated region
        $region109: #{tpu_custom_call.1} parent=107 // pred_check
          %p2785 = pneg %p408
        $region110: #{tpu_custom_call.1} parent=107 // pred_check_branch
          %2787 = sbr.rel (%p2785) target = $region112
        $region111: #{tpu_custom_call.1} parent=107 // pred_region
          %s2788 = sand.u32 %s393, 1
          %s2789 = scalar_lea.sflag [#allocation4], %s2788
          %s2790 = sand.u32 %s393, 1
          %s2791 = smul.addr %s2790, 16
          %s2792 = scalar_lea.vmem [#allocation10], %s2791
          %2793 = dma.done %s2789, 256
        $region112: #{tpu_custom_call.1} parent=107 // pred_fallthru
          _
      $region108: #{tpu_custom_call.1} parent=5 // pred_fallthru
        _
    $region6: #{tpu_custom_call.1} parent=1 // loop_footer
      %s32 = sadd.s32 1, %s28
    $region7: #{tpu_custom_call.1} parent=1 // loop_footer_branch
      %27 = sbr.rel target = $region3
    $region8: #{tpu_custom_call.1} parent=1 // loop_exit
      _
    %2794 = vsyncpa [#allocation3], 1
    %s2795 = scalar_lea.sflag [#allocation3], 1
    %2796 = vsyncpa %s2795, 1
    %2797 = vsyncpa [#allocation6], 1
    %2798 = vsyncpa [#allocation9], 1
    %2799 = vsyncpa [#allocation4], 1
    %s2800 = scalar_lea.sflag [#allocation4], 1
    %2801 = vsyncpa %s2800, 1

</llo_original>
